<compile_context>
chip_gen: v5e
topology: v5e:2x2
jax: 0.10.0
libtpu: 0.0.40
codegen_flags: <defaults>
</compile_context>

<pallas_src>
import functools

import jax
import jax.numpy as jnp
from jax.experimental import pallas as pl
from jax.experimental.pallas import tpu as pltpu


def _round_up(x, m):
    return ((x + m - 1) // m) * m


# ----------------------------------------------------------------------------
# Kernel: one (D, TB) transposed batch tile through all couplings + exp(s).
# Batch lives on the lane axis; every matmul is (Fp, Fp) @ (Fp, TB) so the MXU
# N-width is fully used and the small folded weights are the stationary LHS.
# ----------------------------------------------------------------------------
def _nice_kernel(n_couple, n_lin, d, fp, matmul_dtype,
                 x_ref, w_ref, b_ref, scale_ref, y_ref):
    tb = x_ref.shape[-1]
    xt = x_ref[...]                                        # (D, TB) f32
    if fp > d:                                             # pad features to Fp
        c = jnp.concatenate(
            [xt, jnp.zeros((fp - d, tb), jnp.float32)], axis=0)
    else:
        c = xt
    idx = 0
    for _ in range(n_couple):
        h = c
        for li in range(n_lin):
            w = w_ref[idx]                                 # (Fp, Fp) matmul_dtype
            b = b_ref[idx]                                 # (Fp, 1)  f32
            h = jnp.dot(w, h.astype(matmul_dtype),
                        preferred_element_type=jnp.float32) + b
            if li < n_lin - 1:
                h = jnp.maximum(h, 0.0)                    # ReLU between layers
            idx += 1
        c = c + h                                          # additive coupling
    y_ref[...] = (c[:d, :] * scale_ref[...]).astype(y_ref.dtype)


# ----------------------------------------------------------------------------
# Parameter packing: fold the even/odd permutation into zero rows/cols and
# store the TRANSPOSED weights (for h^T = W^T @ x^T), padded to (Fp, Fp).
# ----------------------------------------------------------------------------
def _pack_params(coupling_params, s, parities, num_layers, D, Fp, matmul_dtype):
    ws, bs = [], []
    for parity, layer in zip(parities, coupling_params):
        if parity == "odd":       # reads even-indexed features, writes odd
            in_idx = jnp.arange(0, D, 2)
            out_idx = jnp.arange(1, D, 2)
        else:                     # reads odd-indexed features, writes even
            in_idx = jnp.arange(1, D, 2)
            out_idx = jnp.arange(0, D, 2)
        for li, (w, b) in enumerate(layer):
            k, n = w.shape
            row_idx = in_idx if li == 0 else jnp.arange(k)            # inputs
            col_idx = out_idx if li == num_layers - 1 else jnp.arange(n)  # outputs
            # Transposed folded weight: Wt[out_feature, in_feature] = w[in, out]
            wt = jnp.zeros((Fp, Fp), jnp.float32)
            wt = wt.at[col_idx[:, None], row_idx[None, :]].set(w.T)
            bp = jnp.zeros((Fp, 1), jnp.float32).at[col_idx, 0].set(b)
            ws.append(wt)
            bs.append(bp)
    w_stack = jnp.stack(ws).astype(matmul_dtype)          # (NL, Fp, Fp)
    b_stack = jnp.stack(bs)                               # (NL, Fp, 1) f32
    scale = jnp.exp(s).reshape(D, 1).astype(jnp.float32)  # (D, 1)
    return w_stack, b_stack, scale


# ----------------------------------------------------------------------------
# Wrapper: tiling / grid selection + pallas_call.
# ----------------------------------------------------------------------------
def nice_forward(x, coupling_params, s, parities, num_layers,
                 matmul_dtype=jnp.bfloat16):
    B, D = x.shape
    dims = [d for layer in coupling_params for (w, _) in layer for d in w.shape]
    Fp = _round_up(max([D] + dims), 8)        # small feature width (not 128!)

    w_stack, b_stack, scale = _pack_params(
        coupling_params, s, parities, num_layers, D, Fp, matmul_dtype)
    n_lin_total = int(w_stack.shape[0])
    param_bytes = (w_stack.size * jnp.dtype(matmul_dtype).itemsize
                   + b_stack.size * 4 + scale.size * 4)
    if param_bytes > (16 << 20):
        # TODO(synk): stream weights per coupling (extra grid axis or
        # emit_pipeline over the weight stack) once the folded stack no longer
        # fits comfortably resident in VMEM (matters first on v7x's 64 MiB).
        raise NotImplementedError(
            "folded weight stack too large for the all-resident VMEM design")

    # --- batch tiling: batch is the MXU lane/N axis -------------------------
    TB_GRAN = 256              # full MXU N width on v6e/v7x
    TB_MAX = 2048              # per-tile batch cap
    n_tiles = max(1, pl.cdiv(B, TB_MAX))
    if B > TB_GRAN:            # >= 2 tiles so both v7x TensorCores get work
        n_tiles = max(n_tiles, 2)
    if n_tiles > 1 and n_tiles % 2 == 1:
        n_tiles += 1           # even tile count for 2-TC balance
    tb = _round_up(pl.cdiv(B, n_tiles), TB_GRAN)
    B_pad = n_tiles * tb

    # Transposed input (D, B_pad): only batch padding, no feature padding.
    xT = jnp.zeros((D, B_pad), jnp.float32).at[:, :B].set(x.T)

    # VMEM budget: double-buffered x/y tiles + resident params + kernel temps.
    block_bytes = D * tb * 4
    temps_bytes = 8 * Fp * tb * 4
    est = 4 * block_bytes + 2 * param_bytes + temps_bytes
    vmem_limit = int(min(max(2 * est + (8 << 20), 32 << 20), 48 << 20))

    kernel = functools.partial(_nice_kernel, len(parities), num_layers,
                               D, Fp, matmul_dtype)
    yT = pl.pallas_call(
        kernel,
        out_shape=jax.ShapeDtypeStruct((D, B_pad), jnp.float32),
        grid_spec=pltpu.PrefetchScalarGridSpec(
            num_scalar_prefetch=0,
            grid=(n_tiles,),
            in_specs=[
                pl.BlockSpec((D, tb), lambda i: (0, i)),                   # x^T tile
                pl.BlockSpec((n_lin_total, Fp, Fp), lambda i: (0, 0, 0)),  # W (resident)
                pl.BlockSpec((n_lin_total, Fp, 1), lambda i: (0, 0, 0)),   # b (resident)
                pl.BlockSpec((D, 1), lambda i: (0, 0)),                    # exp(s)
            ],
            out_specs=pl.BlockSpec((D, tb), lambda i: (0, i)),
        ),
        compiler_params=pltpu.CompilerParams(
            dimension_semantics=("parallel",),
            vmem_limit_bytes=vmem_limit,
        ),
    )(xT, w_stack, b_stack, scale)

    y = yT[:, :B].T
    log_jac = jnp.sum(s)       # independent of x; no need to compute in-kernel
    return y, log_jac


# ----------------------------------------------------------------------------
# Pure-JAX reference (mirrors assumed PyTorch CouplingLayer semantics).
# ----------------------------------------------------------------------------
def nice_reference(x, coupling_params, s, parities, num_layers):
    y = x
    for parity, layer_params in zip(parities, coupling_params):
        x_even, x_odd = y[:, 0::2], y[:, 1::2]
        h = x_even if parity == "odd" else x_odd
        for li, (w, b) in enumerate(layer_params):
            h = h @ w + b
            if li < num_layers - 1:
                h = jnp.maximum(h, 0.0)
        if parity == "odd":
            x_odd = x_odd + h
        else:
            x_even = x_even + h
        y = jnp.stack([x_even, x_odd], axis=-1).reshape(x.shape)
    y = y * jnp.exp(s)
    return y, jnp.sum(s)


def init_params(key, input_dim, hidden_dim, num_layers):
    half = input_dim // 2
    dims = [half] + [hidden_dim] * (num_layers - 1) + [half]
    parities = ["odd", "even", "odd", "even"]
    coupling_params = []
    for _ in parities:
        layer = []
        for li in range(num_layers):
            key, wk = jax.random.split(key)
            w = 0.1 * jax.random.normal(wk, (dims[li], dims[li + 1]), jnp.float32)
            b = jnp.zeros((dims[li + 1],), jnp.float32)
            layer.append((w, b))
        coupling_params.append(layer)
    s = jnp.ones((input_dim,), jnp.float32)   # matches torch.ones(input_dim)
    return coupling_params, s, parities


if __name__ == "__main__":
    B, D, H, NUM_LAYERS = 8, 16, 32, 3

    key = jax.random.PRNGKey(0)
    key, xk = jax.random.split(key)
    x = jax.random.normal(xk, (B, D), jnp.float32)

    coupling_params, s, parities = init_params(key, D, H, NUM_LAYERS)

    y_ref, lj_ref = nice_reference(x, coupling_params, s, parities, NUM_LAYERS)

    # f32 MXU path: tight correctness check.
    y32, lj32 = nice_forward(x, coupling_params, s, parities, NUM_LAYERS,
                             matmul_dtype=jnp.float32)
    jax.block_until_ready((y32, lj32))
    assert jnp.allclose(y32, y_ref, atol=5e-4, rtol=5e-4), "f32 output mismatch"
    assert jnp.allclose(lj32, lj_ref, atol=1e-5), "log-jacobian mismatch"

    # bf16 MXU path (production/perf default): looser tolerance.
    y, log_jac = nice_forward(x, coupling_params, s, parities, NUM_LAYERS,
                              matmul_dtype=jnp.bfloat16)
    jax.block_until_ready((y, log_jac))
    assert jnp.allclose(y, y_ref, atol=5e-2, rtol=5e-2), "bf16 output mismatch"
    assert jnp.allclose(log_jac, lj_ref, atol=1e-5), "log-jacobian mismatch"

    print("KERNEL_OK")
</pallas_src>

<mosaic_0001>
module attributes {stable_mosaic.version = 11 : i64} {
  func.func @_nice_kernel(%arg0: i32, %arg1: memref<16x256xf32, #tpu.memory_space<vmem>>, %arg2: memref<12x32x32xf32, #tpu.memory_space<vmem>>, %arg3: memref<12x32x1xf32, #tpu.memory_space<vmem>>, %arg4: memref<16x1xf32, #tpu.memory_space<vmem>>, %arg5: memref<16x256xf32, #tpu.memory_space<vmem>>) attributes {dimension_semantics = [#tpu.dimension_semantics<parallel>], iteration_bounds = array<i64: 1>, scalar_prefetch = 0 : i64, scratch_operands = 0 : i64, tpu.core_type = #tpu.core_type<tc>, window_params = [{transform_indices = @transform_0, window_bounds = array<i64: 16, 256>}, {pipeline_mode = #tpu.pipeline_mode<synchronous>, transform_indices = @transform_1, window_bounds = array<i64: 12, 32, 32>}, {pipeline_mode = #tpu.pipeline_mode<synchronous>, transform_indices = @transform_2, window_bounds = array<i64: 12, 32, 1>}, {pipeline_mode = #tpu.pipeline_mode<synchronous>, transform_indices = @transform_3, window_bounds = array<i64: 16, 1>}, {transform_indices = @transform_4, window_bounds = array<i64: 16, 256>}]} {
    %c0 = arith.constant 0 : index
    %c0_0 = arith.constant 0 : index
    %0 = vector.load %arg1[%c0, %c0_0] : memref<16x256xf32, #tpu.memory_space<vmem>>, vector<16x256xf32>
    %cst = arith.constant 0.000000e+00 : f32
    %1 = vector.broadcast %cst : f32 to vector<16x256xf32>
    %2 = tpu.concatenate %0, %1 in 0 : vector<16x256xf32>, vector<16x256xf32> -> vector<32x256xf32>
    %c0_1 = arith.constant 0 : index
    %c0_2 = arith.constant 0 : index
    %c0_3 = arith.constant 0 : index
    %3 = vector.load %arg2[%c0_1, %c0_2, %c0_3] : memref<12x32x32xf32, #tpu.memory_space<vmem>>, vector<1x32x32xf32>
    %4 = vector.shape_cast %3 : vector<1x32x32xf32> to vector<32x32xf32>
    %c0_4 = arith.constant 0 : index
    %c0_5 = arith.constant 0 : index
    %c0_6 = arith.constant 0 : index
    %5 = vector.load %arg3[%c0_4, %c0_5, %c0_6] : memref<12x32x1xf32, #tpu.memory_space<vmem>>, vector<1x32x1xf32>
    %6 = vector.shape_cast %5 : vector<1x32x1xf32> to vector<32x1xf32>
    %cst_7 = arith.constant dense<0.000000e+00> : vector<32x256xf32>
    %7 = tpu.matmul %4, %2, %cst_7 {dimension_numbers = #tpu.dot_dimension_numbers<[1], [0], [0], [1], [0, 0, 1, 1], [], []>} : vector<32x32xf32>, vector<32x256xf32>, vector<32x256xf32> -> vector<32x256xf32>
    %8 = vector.broadcast %6 : vector<32x1xf32> to vector<32x256xf32>
    %9 = arith.addf %7, %8 : vector<32x256xf32>
    %cst_8 = arith.constant 0.000000e+00 : f32
    %10 = vector.broadcast %cst_8 : f32 to vector<32x256xf32>
    %11 = arith.maximumf %9, %10 : vector<32x256xf32>
    %c1 = arith.constant 1 : index
    %c0_9 = arith.constant 0 : index
    %c0_10 = arith.constant 0 : index
    %12 = vector.load %arg2[%c1, %c0_9, %c0_10] : memref<12x32x32xf32, #tpu.memory_space<vmem>>, vector<1x32x32xf32>
    %13 = vector.shape_cast %12 : vector<1x32x32xf32> to vector<32x32xf32>
    %c1_11 = arith.constant 1 : index
    %c0_12 = arith.constant 0 : index
    %c0_13 = arith.constant 0 : index
    %14 = vector.load %arg3[%c1_11, %c0_12, %c0_13] : memref<12x32x1xf32, #tpu.memory_space<vmem>>, vector<1x32x1xf32>
    %15 = vector.shape_cast %14 : vector<1x32x1xf32> to vector<32x1xf32>
    %cst_14 = arith.constant dense<0.000000e+00> : vector<32x256xf32>
    %16 = tpu.matmul %13, %11, %cst_14 {dimension_numbers = #tpu.dot_dimension_numbers<[1], [0], [0], [1], [0, 0, 1, 1], [], []>} : vector<32x32xf32>, vector<32x256xf32>, vector<32x256xf32> -> vector<32x256xf32>
    %17 = vector.broadcast %15 : vector<32x1xf32> to vector<32x256xf32>
    %18 = arith.addf %16, %17 : vector<32x256xf32>
    %cst_15 = arith.constant 0.000000e+00 : f32
    %19 = vector.broadcast %cst_15 : f32 to vector<32x256xf32>
    %20 = arith.maximumf %18, %19 : vector<32x256xf32>
    %c2 = arith.constant 2 : index
    %c0_16 = arith.constant 0 : index
    %c0_17 = arith.constant 0 : index
    %21 = vector.load %arg2[%c2, %c0_16, %c0_17] : memref<12x32x32xf32, #tpu.memory_space<vmem>>, vector<1x32x32xf32>
    %22 = vector.shape_cast %21 : vector<1x32x32xf32> to vector<32x32xf32>
    %c2_18 = arith.constant 2 : index
    %c0_19 = arith.constant 0 : index
    %c0_20 = arith.constant 0 : index
    %23 = vector.load %arg3[%c2_18, %c0_19, %c0_20] : memref<12x32x1xf32, #tpu.memory_space<vmem>>, vector<1x32x1xf32>
    %24 = vector.shape_cast %23 : vector<1x32x1xf32> to vector<32x1xf32>
    %cst_21 = arith.constant dense<0.000000e+00> : vector<32x256xf32>
    %25 = tpu.matmul %22, %20, %cst_21 {dimension_numbers = #tpu.dot_dimension_numbers<[1], [0], [0], [1], [0, 0, 1, 1], [], []>} : vector<32x32xf32>, vector<32x256xf32>, vector<32x256xf32> -> vector<32x256xf32>
    %26 = vector.broadcast %24 : vector<32x1xf32> to vector<32x256xf32>
    %27 = arith.addf %25, %26 : vector<32x256xf32>
    %28 = arith.addf %2, %27 : vector<32x256xf32>
    %c3 = arith.constant 3 : index
    %c0_22 = arith.constant 0 : index
    %c0_23 = arith.constant 0 : index
    %29 = vector.load %arg2[%c3, %c0_22, %c0_23] : memref<12x32x32xf32, #tpu.memory_space<vmem>>, vector<1x32x32xf32>
    %30 = vector.shape_cast %29 : vector<1x32x32xf32> to vector<32x32xf32>
    %c3_24 = arith.constant 3 : index
    %c0_25 = arith.constant 0 : index
    %c0_26 = arith.constant 0 : index
    %31 = vector.load %arg3[%c3_24, %c0_25, %c0_26] : memref<12x32x1xf32, #tpu.memory_space<vmem>>, vector<1x32x1xf32>
    %32 = vector.shape_cast %31 : vector<1x32x1xf32> to vector<32x1xf32>
    %cst_27 = arith.constant dense<0.000000e+00> : vector<32x256xf32>
    %33 = tpu.matmul %30, %28, %cst_27 {dimension_numbers = #tpu.dot_dimension_numbers<[1], [0], [0], [1], [0, 0, 1, 1], [], []>} : vector<32x32xf32>, vector<32x256xf32>, vector<32x256xf32> -> vector<32x256xf32>
    %34 = vector.broadcast %32 : vector<32x1xf32> to vector<32x256xf32>
    %35 = arith.addf %33, %34 : vector<32x256xf32>
    %cst_28 = arith.constant 0.000000e+00 : f32
    %36 = vector.broadcast %cst_28 : f32 to vector<32x256xf32>
    %37 = arith.maximumf %35, %36 : vector<32x256xf32>
    %c4 = arith.constant 4 : index
    %c0_29 = arith.constant 0 : index
    %c0_30 = arith.constant 0 : index
    %38 = vector.load %arg2[%c4, %c0_29, %c0_30] : memref<12x32x32xf32, #tpu.memory_space<vmem>>, vector<1x32x32xf32>
    %39 = vector.shape_cast %38 : vector<1x32x32xf32> to vector<32x32xf32>
    %c4_31 = arith.constant 4 : index
    %c0_32 = arith.constant 0 : index
    %c0_33 = arith.constant 0 : index
    %40 = vector.load %arg3[%c4_31, %c0_32, %c0_33] : memref<12x32x1xf32, #tpu.memory_space<vmem>>, vector<1x32x1xf32>
    %41 = vector.shape_cast %40 : vector<1x32x1xf32> to vector<32x1xf32>
    %cst_34 = arith.constant dense<0.000000e+00> : vector<32x256xf32>
    %42 = tpu.matmul %39, %37, %cst_34 {dimension_numbers = #tpu.dot_dimension_numbers<[1], [0], [0], [1], [0, 0, 1, 1], [], []>} : vector<32x32xf32>, vector<32x256xf32>, vector<32x256xf32> -> vector<32x256xf32>
    %43 = vector.broadcast %41 : vector<32x1xf32> to vector<32x256xf32>
    %44 = arith.addf %42, %43 : vector<32x256xf32>
    %cst_35 = arith.constant 0.000000e+00 : f32
    %45 = vector.broadcast %cst_35 : f32 to vector<32x256xf32>
    %46 = arith.maximumf %44, %45 : vector<32x256xf32>
    %c5 = arith.constant 5 : index
    %c0_36 = arith.constant 0 : index
    %c0_37 = arith.constant 0 : index
    %47 = vector.load %arg2[%c5, %c0_36, %c0_37] : memref<12x32x32xf32, #tpu.memory_space<vmem>>, vector<1x32x32xf32>
    %48 = vector.shape_cast %47 : vector<1x32x32xf32> to vector<32x32xf32>
    %c5_38 = arith.constant 5 : index
    %c0_39 = arith.constant 0 : index
    %c0_40 = arith.constant 0 : index
    %49 = vector.load %arg3[%c5_38, %c0_39, %c0_40] : memref<12x32x1xf32, #tpu.memory_space<vmem>>, vector<1x32x1xf32>
    %50 = vector.shape_cast %49 : vector<1x32x1xf32> to vector<32x1xf32>
    %cst_41 = arith.constant dense<0.000000e+00> : vector<32x256xf32>
    %51 = tpu.matmul %48, %46, %cst_41 {dimension_numbers = #tpu.dot_dimension_numbers<[1], [0], [0], [1], [0, 0, 1, 1], [], []>} : vector<32x32xf32>, vector<32x256xf32>, vector<32x256xf32> -> vector<32x256xf32>
    %52 = vector.broadcast %50 : vector<32x1xf32> to vector<32x256xf32>
    %53 = arith.addf %51, %52 : vector<32x256xf32>
    %54 = arith.addf %28, %53 : vector<32x256xf32>
    %c6 = arith.constant 6 : index
    %c0_42 = arith.constant 0 : index
    %c0_43 = arith.constant 0 : index
    %55 = vector.load %arg2[%c6, %c0_42, %c0_43] : memref<12x32x32xf32, #tpu.memory_space<vmem>>, vector<1x32x32xf32>
    %56 = vector.shape_cast %55 : vector<1x32x32xf32> to vector<32x32xf32>
    %c6_44 = arith.constant 6 : index
    %c0_45 = arith.constant 0 : index
    %c0_46 = arith.constant 0 : index
    %57 = vector.load %arg3[%c6_44, %c0_45, %c0_46] : memref<12x32x1xf32, #tpu.memory_space<vmem>>, vector<1x32x1xf32>
    %58 = vector.shape_cast %57 : vector<1x32x1xf32> to vector<32x1xf32>
    %cst_47 = arith.constant dense<0.000000e+00> : vector<32x256xf32>
    %59 = tpu.matmul %56, %54, %cst_47 {dimension_numbers = #tpu.dot_dimension_numbers<[1], [0], [0], [1], [0, 0, 1, 1], [], []>} : vector<32x32xf32>, vector<32x256xf32>, vector<32x256xf32> -> vector<32x256xf32>
    %60 = vector.broadcast %58 : vector<32x1xf32> to vector<32x256xf32>
    %61 = arith.addf %59, %60 : vector<32x256xf32>
    %cst_48 = arith.constant 0.000000e+00 : f32
    %62 = vector.broadcast %cst_48 : f32 to vector<32x256xf32>
    %63 = arith.maximumf %61, %62 : vector<32x256xf32>
    %c7 = arith.constant 7 : index
    %c0_49 = arith.constant 0 : index
    %c0_50 = arith.constant 0 : index
    %64 = vector.load %arg2[%c7, %c0_49, %c0_50] : memref<12x32x32xf32, #tpu.memory_space<vmem>>, vector<1x32x32xf32>
    %65 = vector.shape_cast %64 : vector<1x32x32xf32> to vector<32x32xf32>
    %c7_51 = arith.constant 7 : index
    %c0_52 = arith.constant 0 : index
    %c0_53 = arith.constant 0 : index
    %66 = vector.load %arg3[%c7_51, %c0_52, %c0_53] : memref<12x32x1xf32, #tpu.memory_space<vmem>>, vector<1x32x1xf32>
    %67 = vector.shape_cast %66 : vector<1x32x1xf32> to vector<32x1xf32>
    %cst_54 = arith.constant dense<0.000000e+00> : vector<32x256xf32>
    %68 = tpu.matmul %65, %63, %cst_54 {dimension_numbers = #tpu.dot_dimension_numbers<[1], [0], [0], [1], [0, 0, 1, 1], [], []>} : vector<32x32xf32>, vector<32x256xf32>, vector<32x256xf32> -> vector<32x256xf32>
    %69 = vector.broadcast %67 : vector<32x1xf32> to vector<32x256xf32>
    %70 = arith.addf %68, %69 : vector<32x256xf32>
    %cst_55 = arith.constant 0.000000e+00 : f32
    %71 = vector.broadcast %cst_55 : f32 to vector<32x256xf32>
    %72 = arith.maximumf %70, %71 : vector<32x256xf32>
    %c8 = arith.constant 8 : index
    %c0_56 = arith.constant 0 : index
    %c0_57 = arith.constant 0 : index
    %73 = vector.load %arg2[%c8, %c0_56, %c0_57] : memref<12x32x32xf32, #tpu.memory_space<vmem>>, vector<1x32x32xf32>
    %74 = vector.shape_cast %73 : vector<1x32x32xf32> to vector<32x32xf32>
    %c8_58 = arith.constant 8 : index
    %c0_59 = arith.constant 0 : index
    %c0_60 = arith.constant 0 : index
    %75 = vector.load %arg3[%c8_58, %c0_59, %c0_60] : memref<12x32x1xf32, #tpu.memory_space<vmem>>, vector<1x32x1xf32>
    %76 = vector.shape_cast %75 : vector<1x32x1xf32> to vector<32x1xf32>
    %cst_61 = arith.constant dense<0.000000e+00> : vector<32x256xf32>
    %77 = tpu.matmul %74, %72, %cst_61 {dimension_numbers = #tpu.dot_dimension_numbers<[1], [0], [0], [1], [0, 0, 1, 1], [], []>} : vector<32x32xf32>, vector<32x256xf32>, vector<32x256xf32> -> vector<32x256xf32>
    %78 = vector.broadcast %76 : vector<32x1xf32> to vector<32x256xf32>
    %79 = arith.addf %77, %78 : vector<32x256xf32>
    %80 = arith.addf %54, %79 : vector<32x256xf32>
    %c9 = arith.constant 9 : index
    %c0_62 = arith.constant 0 : index
    %c0_63 = arith.constant 0 : index
    %81 = vector.load %arg2[%c9, %c0_62, %c0_63] : memref<12x32x32xf32, #tpu.memory_space<vmem>>, vector<1x32x32xf32>
    %82 = vector.shape_cast %81 : vector<1x32x32xf32> to vector<32x32xf32>
    %c9_64 = arith.constant 9 : index
    %c0_65 = arith.constant 0 : index
    %c0_66 = arith.constant 0 : index
    %83 = vector.load %arg3[%c9_64, %c0_65, %c0_66] : memref<12x32x1xf32, #tpu.memory_space<vmem>>, vector<1x32x1xf32>
    %84 = vector.shape_cast %83 : vector<1x32x1xf32> to vector<32x1xf32>
    %cst_67 = arith.constant dense<0.000000e+00> : vector<32x256xf32>
    %85 = tpu.matmul %82, %80, %cst_67 {dimension_numbers = #tpu.dot_dimension_numbers<[1], [0], [0], [1], [0, 0, 1, 1], [], []>} : vector<32x32xf32>, vector<32x256xf32>, vector<32x256xf32> -> vector<32x256xf32>
    %86 = vector.broadcast %84 : vector<32x1xf32> to vector<32x256xf32>
    %87 = arith.addf %85, %86 : vector<32x256xf32>
    %cst_68 = arith.constant 0.000000e+00 : f32
    %88 = vector.broadcast %cst_68 : f32 to vector<32x256xf32>
    %89 = arith.maximumf %87, %88 : vector<32x256xf32>
    %c10 = arith.constant 10 : index
    %c0_69 = arith.constant 0 : index
    %c0_70 = arith.constant 0 : index
    %90 = vector.load %arg2[%c10, %c0_69, %c0_70] : memref<12x32x32xf32, #tpu.memory_space<vmem>>, vector<1x32x32xf32>
    %91 = vector.shape_cast %90 : vector<1x32x32xf32> to vector<32x32xf32>
    %c10_71 = arith.constant 10 : index
    %c0_72 = arith.constant 0 : index
    %c0_73 = arith.constant 0 : index
    %92 = vector.load %arg3[%c10_71, %c0_72, %c0_73] : memref<12x32x1xf32, #tpu.memory_space<vmem>>, vector<1x32x1xf32>
    %93 = vector.shape_cast %92 : vector<1x32x1xf32> to vector<32x1xf32>
    %cst_74 = arith.constant dense<0.000000e+00> : vector<32x256xf32>
    %94 = tpu.matmul %91, %89, %cst_74 {dimension_numbers = #tpu.dot_dimension_numbers<[1], [0], [0], [1], [0, 0, 1, 1], [], []>} : vector<32x32xf32>, vector<32x256xf32>, vector<32x256xf32> -> vector<32x256xf32>
    %95 = vector.broadcast %93 : vector<32x1xf32> to vector<32x256xf32>
    %96 = arith.addf %94, %95 : vector<32x256xf32>
    %cst_75 = arith.constant 0.000000e+00 : f32
    %97 = vector.broadcast %cst_75 : f32 to vector<32x256xf32>
    %98 = arith.maximumf %96, %97 : vector<32x256xf32>
    %c11 = arith.constant 11 : index
    %c0_76 = arith.constant 0 : index
    %c0_77 = arith.constant 0 : index
    %99 = vector.load %arg2[%c11, %c0_76, %c0_77] : memref<12x32x32xf32, #tpu.memory_space<vmem>>, vector<1x32x32xf32>
    %100 = vector.shape_cast %99 : vector<1x32x32xf32> to vector<32x32xf32>
    %c11_78 = arith.constant 11 : index
    %c0_79 = arith.constant 0 : index
    %c0_80 = arith.constant 0 : index
    %101 = vector.load %arg3[%c11_78, %c0_79, %c0_80] : memref<12x32x1xf32, #tpu.memory_space<vmem>>, vector<1x32x1xf32>
    %102 = vector.shape_cast %101 : vector<1x32x1xf32> to vector<32x1xf32>
    %cst_81 = arith.constant dense<0.000000e+00> : vector<32x256xf32>
    %103 = tpu.matmul %100, %98, %cst_81 {dimension_numbers = #tpu.dot_dimension_numbers<[1], [0], [0], [1], [0, 0, 1, 1], [], []>} : vector<32x32xf32>, vector<32x256xf32>, vector<32x256xf32> -> vector<32x256xf32>
    %104 = vector.broadcast %102 : vector<32x1xf32> to vector<32x256xf32>
    %105 = arith.addf %103, %104 : vector<32x256xf32>
    %106 = arith.addf %80, %105 : vector<32x256xf32>
    %107 = vector.extract_strided_slice %106 {offsets = [0, 0], sizes = [16, 256], strides = [1, 1]} : vector<32x256xf32> to vector<16x256xf32>
    %c0_82 = arith.constant 0 : index
    %c0_83 = arith.constant 0 : index
    %108 = vector.load %arg4[%c0_82, %c0_83] : memref<16x1xf32, #tpu.memory_space<vmem>>, vector<16x1xf32>
    %109 = vector.broadcast %108 : vector<16x1xf32> to vector<16x256xf32>
    %110 = arith.mulf %107, %109 : vector<16x256xf32>
    %c0_84 = arith.constant 0 : index
    %c0_85 = arith.constant 0 : index
    %111 = vector.load %arg5[%c0_84, %c0_85] : memref<16x256xf32, #tpu.memory_space<vmem>>, vector<16x256xf32>
    tpu.vector_store %arg5[%c0_84, %c0_85], %110 {strides = array<i32>} : memref<16x256xf32, #tpu.memory_space<vmem>>, vector<16x256xf32>,
    return
  }
  func.func @transform_0(%arg0: i32) -> (i32, i32) {
    %c0_i32 = arith.constant 0 : i32
    %c0_i32_0 = arith.constant 0 : i32
    return %c0_i32, %arg0 : i32, i32
  }
  func.func @transform_1(%arg0: i32) -> (i32, i32, i32) {
    %c0_i32 = arith.constant 0 : i32
    %c0_i32_0 = arith.constant 0 : i32
    %c0_i32_1 = arith.constant 0 : i32
    %c0_i32_2 = arith.constant 0 : i32
    return %c0_i32, %c0_i32_0, %c0_i32_1 : i32, i32, i32
  }
  func.func @transform_2(%arg0: i32) -> (i32, i32, i32) {
    %c0_i32 = arith.constant 0 : i32
    %c0_i32_0 = arith.constant 0 : i32
    %c0_i32_1 = arith.constant 0 : i32
    %c0_i32_2 = arith.constant 0 : i32
    return %c0_i32, %c0_i32_0, %c0_i32_1 : i32, i32, i32
  }
  func.func @transform_3(%arg0: i32) -> (i32, i32) {
    %c0_i32 = arith.constant 0 : i32
    %c0_i32_0 = arith.constant 0 : i32
    %c0_i32_1 = arith.constant 0 : i32
    return %c0_i32, %c0_i32_0 : i32, i32
  }
  func.func @transform_4(%arg0: i32) -> (i32, i32) {
    %c0_i32 = arith.constant 0 : i32
    %c0_i32_0 = arith.constant 0 : i32
    return %c0_i32, %arg0 : i32, i32
  }
}

</mosaic_0001>

<llo_original>
// kernel: tpu_custom_call.1
$region0: #{tpu_custom_call.1}
  #allocation0 [shape = 'u32[]', space=smem, size = 0x4, offset = 0x4, fixed_abs, tag = 'smem constant byte address 0x4 - core index']
  #allocation1 [shape = 'u32[72,128]{1,0:T(1,128)}', space=vmem, size = 0x9000, scoped, tag = 'internal scratch']
  %s0 = inlined_call_operand.hbm [shape: f32[16,256], index: 0, kind: input, shape index: {}]
  %s1 = inlined_call_operand.vmem [shape: f32[12,32,32], index: 1, kind: input, shape index: {}]
  %s2 = inlined_call_operand.vmem [shape: f32[12,32,1], index: 2, kind: input, shape index: {}]
  %s3 = inlined_call_operand.vmem [shape: f32[16,1], index: 3, kind: input, shape index: {}]
  %s4 = inlined_call_operand.hbm [shape: f32[16,256], index: 4, kind: output, shape index: {}]
  %s5 = sld [smem:[#allocation0]]
  $region30: #{tpu_custom_call.1} parent=0
    _
  %s7 = ssub.s32 1, %s5
  %s8 = scalar_select 0, %s7, %s5
  $region1: #{tpu_custom_call.1} parent=0
    #allocation2 [shape = 'u8[16384]{0}', space=vmem, size = 0x4000, scoped, tag = 'input window, operand 0, single buffered']
    #allocation3 [shape = 's32[1]{0}', space=sflag, size = 0x4, scoped, tag = 'scoped memory for tpu_custom_call.1']
    #allocation4 [shape = 's32[1]{0}', space=sflag, size = 0x4, scoped, tag = 'scoped memory for tpu_custom_call.1']
    #allocation5 [shape = 'u8[16384]{0}', space=vmem, size = 0x4000, scoped, tag = 'output window, operand 0, single buffered']
    %9 = vsyncpa [#allocation3], 0
    %10 = vsyncpa [#allocation4], 0
    // Predicated region
    $region2: #{tpu_custom_call.1} parent=1 // pred_check
      _
    $region3: #{tpu_custom_call.1} parent=1 // pred_check_branch
      %12 = sbr.rel (0) target = $region5
    $region4: #{tpu_custom_call.1} parent=1 // pred_region
      %14 = vsyncadd [#allocation3], 0
      %s15 = sshll.u32 %s0, 4
      %s16 = int_to_ptr.hbm [resolvable:$true] %s15
      %s17 = sshll.u32 [#allocation2], 4
      %s18 = int_to_ptr.vmem [resolvable:$true] %s17
      %23 = dma.hbm_to_vmem [thread:$0]  %s16, 512, %s18, [#allocation3], 256, 256, 16
    $region5: #{tpu_custom_call.1} parent=1 // pred_fallthru
      _
    // Predicated region
    $region6: #{tpu_custom_call.1} parent=1 // pred_check
      _
    $region7: #{tpu_custom_call.1} parent=1 // pred_check_branch
      %25 = sbr.rel (0) target = $region9
    $region8: #{tpu_custom_call.1} parent=1 // pred_region
      _
    $region9: #{tpu_custom_call.1} parent=1 // pred_fallthru
      _
    // Predicated region
    $region10: #{tpu_custom_call.1} parent=1 // pred_check
      _
    $region11: #{tpu_custom_call.1} parent=1 // pred_check_branch
      %27 = sbr.rel (0) target = $region13
    $region12: #{tpu_custom_call.1} parent=1 // pred_region
      _
    $region13: #{tpu_custom_call.1} parent=1 // pred_fallthru
      _
    // Predicated region
    $region14: #{tpu_custom_call.1} parent=1 // pred_check
      _
    $region15: #{tpu_custom_call.1} parent=1 // pred_check_branch
      %29 = sbr.rel (0) target = $region17
    $region16: #{tpu_custom_call.1} parent=1 // pred_region
      _
    $region17: #{tpu_custom_call.1} parent=1 // pred_fallthru
      _
    // Predicated region
    $region18: #{tpu_custom_call.1} parent=1 // pred_check
      _
    $region19: #{tpu_custom_call.1} parent=1 // pred_check_branch
      %31 = sbr.rel (0) target = $region21
    $region20: #{tpu_custom_call.1} parent=1 // pred_region
      %33 = dma.done [#allocation3], 512
    $region21: #{tpu_custom_call.1} parent=1 // pred_fallthru
      _
    %v34 = vld [vmem:[#allocation2] sm:$0xff]
    %v35 = vld [vmem:[#allocation2 + $0x8] sm:$0xff]
    %v36 = vld [vmem:[#allocation2 + $0x10] sm:$0xff]
    %v37 = vld [vmem:[#allocation2 + $0x18] sm:$0xff]
    %v38 = vld [vmem:[%s1] sm:$0xff]
    %v39 = vld [vmem:[%s1 + $0x8] sm:$0xff]
    %v40 = vld [vmem:[%s1 + $0x10] sm:$0xff]
    %v41 = vld [vmem:[%s1 + $0x18] sm:$0xff]
    %v42 = vld [vmem:[%s2] sm:$0xff]
    %v43 = vld [vmem:[%s2 + $0x8] sm:$0xff]
    %v44 = vld [vmem:[%s2 + $0x10] sm:$0xff]
    %v45 = vld [vmem:[%s2 + $0x18] sm:$0xff]
    %47 = vset.pattern.permute.xlu0 0
    %48 = vperm.xlu0 %47, %v42
    %v49 = vpop.permute.xlu0 %48
    %52 = vset.pattern.permute.xlu0 0
    %53 = vperm.xlu0 %52, %v43
    %v54 = vpop.permute.xlu0 %53
    %57 = vset.pattern.permute.xlu0 0
    %58 = vperm.xlu0 %57, %v44
    %v59 = vpop.permute.xlu0 %58
    %62 = vset.pattern.permute.xlu0 0
    %63 = vperm.xlu0 %62, %v45
    %v64 = vpop.permute.xlu0 %63
    %vm66 = vcmask 261120
    %v68 = vsel %vm66, %v38, 0
    %v71 = vsel %vm66, %v39, 0
    %v74 = vsel %vm66, %v40, 0
    %v77 = vsel %vm66, %v41, 0
    %79 = vmatpush.msra.mxu0 0.0
    %80 = vmatpush.msra.mxu0 0.0
    %81 = vmatpush.msra.mxu0 0.0
    %82 = vmatpush.msra.mxu0 0.0
    %83 = vmatpush.msra.mxu0 0.0
    %84 = vmatpush.msra.mxu0 0.0
    %85 = vmatpush.msra.mxu0 0.0
    %86 = vmatpush.msra.mxu0 0.0
    %87 = vmatpush.msra.mxu0 0.0
    %88 = vmatpush.msra.mxu0 0.0
    %89 = vmatpush.msra.mxu0 0.0
    %90 = vmatpush.msra.mxu0 0.0
    %91 = vmatpush.msra.mxu0 0.0
    %92 = vmatpush.msra.mxu0 0.0
    %93 = vmatpush.msra.mxu0 %v36
    %94 = vmatpush.msra.mxu0 %v34
    %95 = vmatmul.f32.gmra.mxu0 %v68
    %v96 = vpop.f32.mrf.mxu0
    %v97 = vadd.f32 %v49, %v96
    %98 = vmatmul.f32.gmra.mxu0 %v71
    %v99 = vpop.f32.mrf.mxu0
    %v100 = vadd.f32 %v54, %v99
    %101 = vmatmul.f32.gmra.mxu0 %v74
    %v102 = vpop.f32.mrf.mxu0
    %v103 = vadd.f32 %v59, %v102
    %104 = vmatmul.f32.gmra.mxu0 %v77
    %v105 = vpop.f32.mrf.mxu0
    %v106 = vadd.f32 %v64, %v105
    %107 = vdwg.mxu0
    %108 = vmatpush.msra.mxu0 0.0
    %109 = vmatpush.msra.mxu0 0.0
    %110 = vmatpush.msra.mxu0 0.0
    %111 = vmatpush.msra.mxu0 0.0
    %112 = vmatpush.msra.mxu0 0.0
    %113 = vmatpush.msra.mxu0 0.0
    %114 = vmatpush.msra.mxu0 0.0
    %115 = vmatpush.msra.mxu0 0.0
    %116 = vmatpush.msra.mxu0 0.0
    %117 = vmatpush.msra.mxu0 0.0
    %118 = vmatpush.msra.mxu0 0.0
    %119 = vmatpush.msra.mxu0 0.0
    %120 = vmatpush.msra.mxu0 0.0
    %121 = vmatpush.msra.mxu0 0.0
    %122 = vmatpush.msra.mxu0 %v37
    %123 = vmatpush.msra.mxu0 %v35
    %124 = vmatmul.f32.gmra.mxu0 %v68
    %v125 = vpop.f32.mrf.mxu0
    %v126 = vadd.f32 %v49, %v125
    %127 = vmatmul.f32.gmra.mxu0 %v71
    %v128 = vpop.f32.mrf.mxu0
    %v129 = vadd.f32 %v54, %v128
    %130 = vmatmul.f32.gmra.mxu0 %v74
    %v131 = vpop.f32.mrf.mxu0
    %v132 = vadd.f32 %v59, %v131
    %133 = vmatmul.f32.gmra.mxu0 %v77
    %v134 = vpop.f32.mrf.mxu0
    %v135 = vadd.f32 %v64, %v134
    %136 = vdwg.mxu0
    %v137 = vmax.f32 %v97, 0.0
    %v138 = vmax.f32 %v126, 0.0
    %v139 = vmax.f32 %v100, 0.0
    %v140 = vmax.f32 %v129, 0.0
    %v141 = vmax.f32 %v103, 0.0
    %v142 = vmax.f32 %v132, 0.0
    %v143 = vmax.f32 %v106, 0.0
    %v144 = vmax.f32 %v135, 0.0
    %s145 = scalar_lea.vmem %s1, 32
    %v146 = vld [vmem:[%s145] sm:$0xff]
    %v147 = vld [vmem:[%s145 + $0x8] sm:$0xff]
    %v148 = vld [vmem:[%s145 + $0x10] sm:$0xff]
    %v149 = vld [vmem:[%s145 + $0x18] sm:$0xff]
    %s150 = scalar_lea.vmem %s2, 32
    %v151 = vld [vmem:[%s150] sm:$0xff]
    %v152 = vld [vmem:[%s150 + $0x8] sm:$0xff]
    %v153 = vld [vmem:[%s150 + $0x10] sm:$0xff]
    %v154 = vld [vmem:[%s150 + $0x18] sm:$0xff]
    %156 = vset.pattern.permute.xlu0 0
    %157 = vperm.xlu0 %156, %v151
    %v158 = vpop.permute.xlu0 %157
    %161 = vset.pattern.permute.xlu0 0
    %162 = vperm.xlu0 %161, %v152
    %v163 = vpop.permute.xlu0 %162
    %166 = vset.pattern.permute.xlu0 0
    %167 = vperm.xlu0 %166, %v153
    %v168 = vpop.permute.xlu0 %167
    %171 = vset.pattern.permute.xlu0 0
    %172 = vperm.xlu0 %171, %v154
    %v173 = vpop.permute.xlu0 %172
    %v176 = vsel %vm66, %v146, 0
    %v179 = vsel %vm66, %v147, 0
    %v182 = vsel %vm66, %v148, 0
    %v185 = vsel %vm66, %v149, 0
    %187 = vmatpush.msra.mxu0 0.0
    %188 = vmatpush.msra.mxu0 0.0
    %189 = vmatpush.msra.mxu0 0.0
    %190 = vmatpush.msra.mxu0 0.0
    %191 = vmatpush.msra.mxu0 0.0
    %192 = vmatpush.msra.mxu0 0.0
    %193 = vmatpush.msra.mxu0 0.0
    %194 = vmatpush.msra.mxu0 0.0
    %195 = vmatpush.msra.mxu0 0.0
    %196 = vmatpush.msra.mxu0 0.0
    %197 = vmatpush.msra.mxu0 0.0
    %198 = vmatpush.msra.mxu0 0.0
    %199 = vmatpush.msra.mxu0 %v143
    %200 = vmatpush.msra.mxu0 %v141
    %201 = vmatpush.msra.mxu0 %v139
    %202 = vmatpush.msra.mxu0 %v137
    %203 = vmatmul.f32.gmra.mxu0 %v176
    %v204 = vpop.f32.mrf.mxu0
    %v205 = vadd.f32 %v158, %v204
    %206 = vmatmul.f32.gmra.mxu0 %v179
    %v207 = vpop.f32.mrf.mxu0
    %v208 = vadd.f32 %v163, %v207
    %209 = vmatmul.f32.gmra.mxu0 %v182
    %v210 = vpop.f32.mrf.mxu0
    %v211 = vadd.f32 %v168, %v210
    %212 = vmatmul.f32.gmra.mxu0 %v185
    %v213 = vpop.f32.mrf.mxu0
    %v214 = vadd.f32 %v173, %v213
    %215 = vdwg.mxu0
    %216 = vmatpush.msra.mxu0 0.0
    %217 = vmatpush.msra.mxu0 0.0
    %218 = vmatpush.msra.mxu0 0.0
    %219 = vmatpush.msra.mxu0 0.0
    %220 = vmatpush.msra.mxu0 0.0
    %221 = vmatpush.msra.mxu0 0.0
    %222 = vmatpush.msra.mxu0 0.0
    %223 = vmatpush.msra.mxu0 0.0
    %224 = vmatpush.msra.mxu0 0.0
    %225 = vmatpush.msra.mxu0 0.0
    %226 = vmatpush.msra.mxu0 0.0
    %227 = vmatpush.msra.mxu0 0.0
    %228 = vmatpush.msra.mxu0 %v144
    %229 = vmatpush.msra.mxu0 %v142
    %230 = vmatpush.msra.mxu0 %v140
    %231 = vmatpush.msra.mxu0 %v138
    %232 = vmatmul.f32.gmra.mxu0 %v176
    %v233 = vpop.f32.mrf.mxu0
    %v234 = vadd.f32 %v158, %v233
    %235 = vmatmul.f32.gmra.mxu0 %v179
    %v236 = vpop.f32.mrf.mxu0
    %v237 = vadd.f32 %v163, %v236
    %238 = vmatmul.f32.gmra.mxu0 %v182
    %v239 = vpop.f32.mrf.mxu0
    %v240 = vadd.f32 %v168, %v239
    %241 = vmatmul.f32.gmra.mxu0 %v185
    %v242 = vpop.f32.mrf.mxu0
    %v243 = vadd.f32 %v173, %v242
    %244 = vdwg.mxu0
    %v245 = vmax.f32 %v205, 0.0
    %v246 = vmax.f32 %v234, 0.0
    %v247 = vmax.f32 %v208, 0.0
    %v248 = vmax.f32 %v237, 0.0
    %v249 = vmax.f32 %v211, 0.0
    %v250 = vmax.f32 %v240, 0.0
    %v251 = vmax.f32 %v214, 0.0
    %v252 = vmax.f32 %v243, 0.0
    %s253 = scalar_lea.vmem %s1, 64
    %v254 = vld [vmem:[%s253] sm:$0xff]
    %v255 = vld [vmem:[%s253 + $0x8] sm:$0xff]
    %v256 = vld [vmem:[%s253 + $0x10] sm:$0xff]
    %v257 = vld [vmem:[%s253 + $0x18] sm:$0xff]
    %s258 = scalar_lea.vmem %s2, 64
    %v259 = vld [vmem:[%s258] sm:$0xff]
    %v260 = vld [vmem:[%s258 + $0x8] sm:$0xff]
    %v261 = vld [vmem:[%s258 + $0x10] sm:$0xff]
    %v262 = vld [vmem:[%s258 + $0x18] sm:$0xff]
    %264 = vset.pattern.permute.xlu0 0
    %265 = vperm.xlu0 %264, %v259
    %v266 = vpop.permute.xlu0 %265
    %269 = vset.pattern.permute.xlu0 0
    %270 = vperm.xlu0 %269, %v260
    %v271 = vpop.permute.xlu0 %270
    %274 = vset.pattern.permute.xlu0 0
    %275 = vperm.xlu0 %274, %v261
    %v276 = vpop.permute.xlu0 %275
    %279 = vset.pattern.permute.xlu0 0
    %280 = vperm.xlu0 %279, %v262
    %v281 = vpop.permute.xlu0 %280
    %v284 = vsel %vm66, %v254, 0
    %v287 = vsel %vm66, %v255, 0
    %v290 = vsel %vm66, %v256, 0
    %v293 = vsel %vm66, %v257, 0
    %295 = vmatpush.msra.mxu0 0.0
    %296 = vmatpush.msra.mxu0 0.0
    %297 = vmatpush.msra.mxu0 0.0
    %298 = vmatpush.msra.mxu0 0.0
    %299 = vmatpush.msra.mxu0 0.0
    %300 = vmatpush.msra.mxu0 0.0
    %301 = vmatpush.msra.mxu0 0.0
    %302 = vmatpush.msra.mxu0 0.0
    %303 = vmatpush.msra.mxu0 0.0
    %304 = vmatpush.msra.mxu0 0.0
    %305 = vmatpush.msra.mxu0 0.0
    %306 = vmatpush.msra.mxu0 0.0
    %307 = vmatpush.msra.mxu0 %v251
    %308 = vmatpush.msra.mxu0 %v249
    %309 = vmatpush.msra.mxu0 %v247
    %310 = vmatpush.msra.mxu0 %v245
    %311 = vmatmul.f32.gmra.mxu0 %v284
    %v312 = vpop.f32.mrf.mxu0
    %v313 = vadd.f32 %v266, %v312
    %314 = vmatmul.f32.gmra.mxu0 %v287
    %v315 = vpop.f32.mrf.mxu0
    %v316 = vadd.f32 %v271, %v315
    %317 = vmatmul.f32.gmra.mxu0 %v290
    %v318 = vpop.f32.mrf.mxu0
    %v319 = vadd.f32 %v276, %v318
    %320 = vmatmul.f32.gmra.mxu0 %v293
    %v321 = vpop.f32.mrf.mxu0
    %v322 = vadd.f32 %v281, %v321
    %323 = vdwg.mxu0
    %324 = vmatpush.msra.mxu0 0.0
    %325 = vmatpush.msra.mxu0 0.0
    %326 = vmatpush.msra.mxu0 0.0
    %327 = vmatpush.msra.mxu0 0.0
    %328 = vmatpush.msra.mxu0 0.0
    %329 = vmatpush.msra.mxu0 0.0
    %330 = vmatpush.msra.mxu0 0.0
    %331 = vmatpush.msra.mxu0 0.0
    %332 = vmatpush.msra.mxu0 0.0
    %333 = vmatpush.msra.mxu0 0.0
    %334 = vmatpush.msra.mxu0 0.0
    %335 = vmatpush.msra.mxu0 0.0
    %336 = vmatpush.msra.mxu0 %v252
    %337 = vmatpush.msra.mxu0 %v250
    %338 = vmatpush.msra.mxu0 %v248
    %339 = vmatpush.msra.mxu0 %v246
    %340 = vmatmul.f32.gmra.mxu0 %v284
    %v341 = vpop.f32.mrf.mxu0
    %v342 = vadd.f32 %v266, %v341
    %343 = vmatmul.f32.gmra.mxu0 %v287
    %v344 = vpop.f32.mrf.mxu0
    %v345 = vadd.f32 %v271, %v344
    %346 = vmatmul.f32.gmra.mxu0 %v290
    %v347 = vpop.f32.mrf.mxu0
    %v348 = vadd.f32 %v276, %v347
    %349 = vmatmul.f32.gmra.mxu0 %v293
    %v350 = vpop.f32.mrf.mxu0
    %v351 = vadd.f32 %v281, %v350
    %352 = vdwg.mxu0
    %v353 = vadd.f32 %v34, %v313
    %v354 = vadd.f32 %v35, %v342
    %v355 = vadd.f32 %v36, %v316
    %v356 = vadd.f32 %v37, %v345
    %v357 = vadd.f32 %v319, 0.0
    %v358 = vadd.f32 %v348, 0.0
    %v359 = vadd.f32 %v322, 0.0
    %v360 = vadd.f32 %v351, 0.0
    %s361 = scalar_lea.vmem %s1, 96
    %v362 = vld [vmem:[%s361] sm:$0xff]
    %v363 = vld [vmem:[%s361 + $0x8] sm:$0xff]
    %v364 = vld [vmem:[%s361 + $0x10] sm:$0xff]
    %v365 = vld [vmem:[%s361 + $0x18] sm:$0xff]
    %s366 = scalar_lea.vmem %s2, 96
    %v367 = vld [vmem:[%s366] sm:$0xff]
    %v368 = vld [vmem:[%s366 + $0x8] sm:$0xff]
    %v369 = vld [vmem:[%s366 + $0x10] sm:$0xff]
    %v370 = vld [vmem:[%s366 + $0x18] sm:$0xff]
    %372 = vset.pattern.permute.xlu0 0
    %373 = vperm.xlu0 %372, %v367
    %v374 = vpop.permute.xlu0 %373
    %377 = vset.pattern.permute.xlu0 0
    %378 = vperm.xlu0 %377, %v368
    %v379 = vpop.permute.xlu0 %378
    %382 = vset.pattern.permute.xlu0 0
    %383 = vperm.xlu0 %382, %v369
    %v384 = vpop.permute.xlu0 %383
    %387 = vset.pattern.permute.xlu0 0
    %388 = vperm.xlu0 %387, %v370
    %v389 = vpop.permute.xlu0 %388
    %v392 = vsel %vm66, %v362, 0
    %v395 = vsel %vm66, %v363, 0
    %v398 = vsel %vm66, %v364, 0
    %v401 = vsel %vm66, %v365, 0
    %403 = vmatpush.msra.mxu0 0.0
    %404 = vmatpush.msra.mxu0 0.0
    %405 = vmatpush.msra.mxu0 0.0
    %406 = vmatpush.msra.mxu0 0.0
    %407 = vmatpush.msra.mxu0 0.0
    %408 = vmatpush.msra.mxu0 0.0
    %409 = vmatpush.msra.mxu0 0.0
    %410 = vmatpush.msra.mxu0 0.0
    %411 = vmatpush.msra.mxu0 0.0
    %412 = vmatpush.msra.mxu0 0.0
    %413 = vmatpush.msra.mxu0 0.0
    %414 = vmatpush.msra.mxu0 0.0
    %415 = vmatpush.msra.mxu0 %v359
    %416 = vmatpush.msra.mxu0 %v357
    %417 = vmatpush.msra.mxu0 %v355
    %418 = vmatpush.msra.mxu0 %v353
    %419 = vmatmul.f32.gmra.mxu0 %v392
    %v420 = vpop.f32.mrf.mxu0
    %v421 = vadd.f32 %v374, %v420
    %422 = vmatmul.f32.gmra.mxu0 %v395
    %v423 = vpop.f32.mrf.mxu0
    %v424 = vadd.f32 %v379, %v423
    %425 = vmatmul.f32.gmra.mxu0 %v398
    %v426 = vpop.f32.mrf.mxu0
    %v427 = vadd.f32 %v384, %v426
    %428 = vmatmul.f32.gmra.mxu0 %v401
    %v429 = vpop.f32.mrf.mxu0
    %v430 = vadd.f32 %v389, %v429
    %431 = vdwg.mxu0
    %432 = vmatpush.msra.mxu0 0.0
    %433 = vmatpush.msra.mxu0 0.0
    %434 = vmatpush.msra.mxu0 0.0
    %435 = vmatpush.msra.mxu0 0.0
    %436 = vmatpush.msra.mxu0 0.0
    %437 = vmatpush.msra.mxu0 0.0
    %438 = vmatpush.msra.mxu0 0.0
    %439 = vmatpush.msra.mxu0 0.0
    %440 = vmatpush.msra.mxu0 0.0
    %441 = vmatpush.msra.mxu0 0.0
    %442 = vmatpush.msra.mxu0 0.0
    %443 = vmatpush.msra.mxu0 0.0
    %444 = vmatpush.msra.mxu0 %v360
    %445 = vmatpush.msra.mxu0 %v358
    %446 = vmatpush.msra.mxu0 %v356
    %447 = vmatpush.msra.mxu0 %v354
    %448 = vmatmul.f32.gmra.mxu0 %v392
    %v449 = vpop.f32.mrf.mxu0
    %v450 = vadd.f32 %v374, %v449
    %451 = vmatmul.f32.gmra.mxu0 %v395
    %v452 = vpop.f32.mrf.mxu0
    %v453 = vadd.f32 %v379, %v452
    %454 = vmatmul.f32.gmra.mxu0 %v398
    %v455 = vpop.f32.mrf.mxu0
    %v456 = vadd.f32 %v384, %v455
    %457 = vmatmul.f32.gmra.mxu0 %v401
    %v458 = vpop.f32.mrf.mxu0
    %v459 = vadd.f32 %v389, %v458
    %460 = vdwg.mxu0
    %v461 = vmax.f32 %v421, 0.0
    %v462 = vmax.f32 %v450, 0.0
    %v463 = vmax.f32 %v424, 0.0
    %v464 = vmax.f32 %v453, 0.0
    %v465 = vmax.f32 %v427, 0.0
    %v466 = vmax.f32 %v456, 0.0
    %v467 = vmax.f32 %v430, 0.0
    %v468 = vmax.f32 %v459, 0.0
    %s469 = scalar_lea.vmem %s1, 128
    %v470 = vld [vmem:[%s469] sm:$0xff]
    %v471 = vld [vmem:[%s469 + $0x8] sm:$0xff]
    %v472 = vld [vmem:[%s469 + $0x10] sm:$0xff]
    %v473 = vld [vmem:[%s469 + $0x18] sm:$0xff]
    %s474 = scalar_lea.vmem %s2, 128
    %v475 = vld [vmem:[%s474] sm:$0xff]
    %v476 = vld [vmem:[%s474 + $0x8] sm:$0xff]
    %v477 = vld [vmem:[%s474 + $0x10] sm:$0xff]
    %v478 = vld [vmem:[%s474 + $0x18] sm:$0xff]
    %480 = vset.pattern.permute.xlu0 0
    %481 = vperm.xlu0 %480, %v475
    %v482 = vpop.permute.xlu0 %481
    %485 = vset.pattern.permute.xlu0 0
    %486 = vperm.xlu0 %485, %v476
    %v487 = vpop.permute.xlu0 %486
    %490 = vset.pattern.permute.xlu0 0
    %491 = vperm.xlu0 %490, %v477
    %v492 = vpop.permute.xlu0 %491
    %495 = vset.pattern.permute.xlu0 0
    %496 = vperm.xlu0 %495, %v478
    %v497 = vpop.permute.xlu0 %496
    %v500 = vsel %vm66, %v470, 0
    %v503 = vsel %vm66, %v471, 0
    %v506 = vsel %vm66, %v472, 0
    %v509 = vsel %vm66, %v473, 0
    %511 = vmatpush.msra.mxu0 0.0
    %512 = vmatpush.msra.mxu0 0.0
    %513 = vmatpush.msra.mxu0 0.0
    %514 = vmatpush.msra.mxu0 0.0
    %515 = vmatpush.msra.mxu0 0.0
    %516 = vmatpush.msra.mxu0 0.0
    %517 = vmatpush.msra.mxu0 0.0
    %518 = vmatpush.msra.mxu0 0.0
    %519 = vmatpush.msra.mxu0 0.0
    %520 = vmatpush.msra.mxu0 0.0
    %521 = vmatpush.msra.mxu0 0.0
    %522 = vmatpush.msra.mxu0 0.0
    %523 = vmatpush.msra.mxu0 %v467
    %524 = vmatpush.msra.mxu0 %v465
    %525 = vmatpush.msra.mxu0 %v463
    %526 = vmatpush.msra.mxu0 %v461
    %527 = vmatmul.f32.gmra.mxu0 %v500
    %v528 = vpop.f32.mrf.mxu0
    %v529 = vadd.f32 %v482, %v528
    %530 = vmatmul.f32.gmra.mxu0 %v503
    %v531 = vpop.f32.mrf.mxu0
    %v532 = vadd.f32 %v487, %v531
    %533 = vmatmul.f32.gmra.mxu0 %v506
    %v534 = vpop.f32.mrf.mxu0
    %v535 = vadd.f32 %v492, %v534
    %536 = vmatmul.f32.gmra.mxu0 %v509
    %v537 = vpop.f32.mrf.mxu0
    %v538 = vadd.f32 %v497, %v537
    %539 = vdwg.mxu0
    %540 = vmatpush.msra.mxu0 0.0
    %541 = vmatpush.msra.mxu0 0.0
    %542 = vmatpush.msra.mxu0 0.0
    %543 = vmatpush.msra.mxu0 0.0
    %544 = vmatpush.msra.mxu0 0.0
    %545 = vmatpush.msra.mxu0 0.0
    %546 = vmatpush.msra.mxu0 0.0
    %547 = vmatpush.msra.mxu0 0.0
    %548 = vmatpush.msra.mxu0 0.0
    %549 = vmatpush.msra.mxu0 0.0
    %550 = vmatpush.msra.mxu0 0.0
    %551 = vmatpush.msra.mxu0 0.0
    %552 = vmatpush.msra.mxu0 %v468
    %553 = vmatpush.msra.mxu0 %v466
    %554 = vmatpush.msra.mxu0 %v464
    %555 = vmatpush.msra.mxu0 %v462
    %556 = vmatmul.f32.gmra.mxu0 %v500
    %v557 = vpop.f32.mrf.mxu0
    %v558 = vadd.f32 %v482, %v557
    %559 = vmatmul.f32.gmra.mxu0 %v503
    %v560 = vpop.f32.mrf.mxu0
    %v561 = vadd.f32 %v487, %v560
    %562 = vmatmul.f32.gmra.mxu0 %v506
    %v563 = vpop.f32.mrf.mxu0
    %v564 = vadd.f32 %v492, %v563
    %565 = vmatmul.f32.gmra.mxu0 %v509
    %v566 = vpop.f32.mrf.mxu0
    %v567 = vadd.f32 %v497, %v566
    %568 = vdwg.mxu0
    %v569 = vmax.f32 %v529, 0.0
    %v570 = vmax.f32 %v558, 0.0
    %v571 = vmax.f32 %v532, 0.0
    %v572 = vmax.f32 %v561, 0.0
    %v573 = vmax.f32 %v535, 0.0
    %v574 = vmax.f32 %v564, 0.0
    %v575 = vmax.f32 %v538, 0.0
    %v576 = vmax.f32 %v567, 0.0
    %s577 = scalar_lea.vmem %s1, 160
    %v578 = vld [vmem:[%s577] sm:$0xff]
    %v579 = vld [vmem:[%s577 + $0x8] sm:$0xff]
    %v580 = vld [vmem:[%s577 + $0x10] sm:$0xff]
    %v581 = vld [vmem:[%s577 + $0x18] sm:$0xff]
    %s582 = scalar_lea.vmem %s2, 160
    %v583 = vld [vmem:[%s582] sm:$0xff]
    %v584 = vld [vmem:[%s582 + $0x8] sm:$0xff]
    %v585 = vld [vmem:[%s582 + $0x10] sm:$0xff]
    %v586 = vld [vmem:[%s582 + $0x18] sm:$0xff]
    %588 = vset.pattern.permute.xlu0 0
    %589 = vperm.xlu0 %588, %v583
    %v590 = vpop.permute.xlu0 %589
    %593 = vset.pattern.permute.xlu0 0
    %594 = vperm.xlu0 %593, %v584
    %v595 = vpop.permute.xlu0 %594
    %598 = vset.pattern.permute.xlu0 0
    %599 = vperm.xlu0 %598, %v585
    %v600 = vpop.permute.xlu0 %599
    %603 = vset.pattern.permute.xlu0 0
    %604 = vperm.xlu0 %603, %v586
    %v605 = vpop.permute.xlu0 %604
    %v608 = vsel %vm66, %v578, 0
    %v611 = vsel %vm66, %v579, 0
    %v614 = vsel %vm66, %v580, 0
    %v617 = vsel %vm66, %v581, 0
    %619 = vmatpush.msra.mxu0 0.0
    %620 = vmatpush.msra.mxu0 0.0
    %621 = vmatpush.msra.mxu0 0.0
    %622 = vmatpush.msra.mxu0 0.0
    %623 = vmatpush.msra.mxu0 0.0
    %624 = vmatpush.msra.mxu0 0.0
    %625 = vmatpush.msra.mxu0 0.0
    %626 = vmatpush.msra.mxu0 0.0
    %627 = vmatpush.msra.mxu0 0.0
    %628 = vmatpush.msra.mxu0 0.0
    %629 = vmatpush.msra.mxu0 0.0
    %630 = vmatpush.msra.mxu0 0.0
    %631 = vmatpush.msra.mxu0 %v575
    %632 = vmatpush.msra.mxu0 %v573
    %633 = vmatpush.msra.mxu0 %v571
    %634 = vmatpush.msra.mxu0 %v569
    %635 = vmatmul.f32.gmra.mxu0 %v608
    %v636 = vpop.f32.mrf.mxu0
    %v637 = vadd.f32 %v590, %v636
    %638 = vmatmul.f32.gmra.mxu0 %v611
    %v639 = vpop.f32.mrf.mxu0
    %v640 = vadd.f32 %v595, %v639
    %641 = vmatmul.f32.gmra.mxu0 %v614
    %v642 = vpop.f32.mrf.mxu0
    %v643 = vadd.f32 %v600, %v642
    %644 = vmatmul.f32.gmra.mxu0 %v617
    %v645 = vpop.f32.mrf.mxu0
    %v646 = vadd.f32 %v605, %v645
    %647 = vdwg.mxu0
    %648 = vmatpush.msra.mxu0 0.0
    %649 = vmatpush.msra.mxu0 0.0
    %650 = vmatpush.msra.mxu0 0.0
    %651 = vmatpush.msra.mxu0 0.0
    %652 = vmatpush.msra.mxu0 0.0
    %653 = vmatpush.msra.mxu0 0.0
    %654 = vmatpush.msra.mxu0 0.0
    %655 = vmatpush.msra.mxu0 0.0
    %656 = vmatpush.msra.mxu0 0.0
    %657 = vmatpush.msra.mxu0 0.0
    %658 = vmatpush.msra.mxu0 0.0
    %659 = vmatpush.msra.mxu0 0.0
    %660 = vmatpush.msra.mxu0 %v576
    %661 = vmatpush.msra.mxu0 %v574
    %662 = vmatpush.msra.mxu0 %v572
    %663 = vmatpush.msra.mxu0 %v570
    %664 = vmatmul.f32.gmra.mxu0 %v608
    %v665 = vpop.f32.mrf.mxu0
    %v666 = vadd.f32 %v590, %v665
    %667 = vmatmul.f32.gmra.mxu0 %v611
    %v668 = vpop.f32.mrf.mxu0
    %v669 = vadd.f32 %v595, %v668
    %670 = vmatmul.f32.gmra.mxu0 %v614
    %v671 = vpop.f32.mrf.mxu0
    %v672 = vadd.f32 %v600, %v671
    %673 = vmatmul.f32.gmra.mxu0 %v617
    %v674 = vpop.f32.mrf.mxu0
    %v675 = vadd.f32 %v605, %v674
    %676 = vdwg.mxu0
    %v677 = vadd.f32 %v353, %v637
    %v678 = vadd.f32 %v354, %v666
    %v679 = vadd.f32 %v355, %v640
    %v680 = vadd.f32 %v356, %v669
    %v681 = vadd.f32 %v357, %v643
    %v682 = vadd.f32 %v358, %v672
    %v683 = vadd.f32 %v359, %v646
    %v684 = vadd.f32 %v360, %v675
    %s685 = scalar_lea.vmem %s1, 192
    %v686 = vld [vmem:[%s685] sm:$0xff]
    %v687 = vld [vmem:[%s685 + $0x8] sm:$0xff]
    %v688 = vld [vmem:[%s685 + $0x10] sm:$0xff]
    %v689 = vld [vmem:[%s685 + $0x18] sm:$0xff]
    %s690 = scalar_lea.vmem %s2, 192
    %v691 = vld [vmem:[%s690] sm:$0xff]
    %v692 = vld [vmem:[%s690 + $0x8] sm:$0xff]
    %v693 = vld [vmem:[%s690 + $0x10] sm:$0xff]
    %v694 = vld [vmem:[%s690 + $0x18] sm:$0xff]
    %696 = vset.pattern.permute.xlu0 0
    %697 = vperm.xlu0 %696, %v691
    %v698 = vpop.permute.xlu0 %697
    %701 = vset.pattern.permute.xlu0 0
    %702 = vperm.xlu0 %701, %v692
    %v703 = vpop.permute.xlu0 %702
    %706 = vset.pattern.permute.xlu0 0
    %707 = vperm.xlu0 %706, %v693
    %v708 = vpop.permute.xlu0 %707
    %711 = vset.pattern.permute.xlu0 0
    %712 = vperm.xlu0 %711, %v694
    %v713 = vpop.permute.xlu0 %712
    %v716 = vsel %vm66, %v686, 0
    %v719 = vsel %vm66, %v687, 0
    %v722 = vsel %vm66, %v688, 0
    %v725 = vsel %vm66, %v689, 0
    %727 = vmatpush.msra.mxu0 0.0
    %728 = vmatpush.msra.mxu0 0.0
    %729 = vmatpush.msra.mxu0 0.0
    %730 = vmatpush.msra.mxu0 0.0
    %731 = vmatpush.msra.mxu0 0.0
    %732 = vmatpush.msra.mxu0 0.0
    %733 = vmatpush.msra.mxu0 0.0
    %734 = vmatpush.msra.mxu0 0.0
    %735 = vmatpush.msra.mxu0 0.0
    %736 = vmatpush.msra.mxu0 0.0
    %737 = vmatpush.msra.mxu0 0.0
    %738 = vmatpush.msra.mxu0 0.0
    %739 = vmatpush.msra.mxu0 %v683
    %740 = vmatpush.msra.mxu0 %v681
    %741 = vmatpush.msra.mxu0 %v679
    %742 = vmatpush.msra.mxu0 %v677
    %743 = vmatmul.f32.gmra.mxu0 %v716
    %v744 = vpop.f32.mrf.mxu0
    %v745 = vadd.f32 %v698, %v744
    %746 = vmatmul.f32.gmra.mxu0 %v719
    %v747 = vpop.f32.mrf.mxu0
    %v748 = vadd.f32 %v703, %v747
    %749 = vmatmul.f32.gmra.mxu0 %v722
    %v750 = vpop.f32.mrf.mxu0
    %v751 = vadd.f32 %v708, %v750
    %752 = vmatmul.f32.gmra.mxu0 %v725
    %v753 = vpop.f32.mrf.mxu0
    %v754 = vadd.f32 %v713, %v753
    %755 = vdwg.mxu0
    %756 = vmatpush.msra.mxu0 0.0
    %757 = vmatpush.msra.mxu0 0.0
    %758 = vmatpush.msra.mxu0 0.0
    %759 = vmatpush.msra.mxu0 0.0
    %760 = vmatpush.msra.mxu0 0.0
    %761 = vmatpush.msra.mxu0 0.0
    %762 = vmatpush.msra.mxu0 0.0
    %763 = vmatpush.msra.mxu0 0.0
    %764 = vmatpush.msra.mxu0 0.0
    %765 = vmatpush.msra.mxu0 0.0
    %766 = vmatpush.msra.mxu0 0.0
    %767 = vmatpush.msra.mxu0 0.0
    %768 = vmatpush.msra.mxu0 %v684
    %769 = vmatpush.msra.mxu0 %v682
    %770 = vmatpush.msra.mxu0 %v680
    %771 = vmatpush.msra.mxu0 %v678
    %772 = vmatmul.f32.gmra.mxu0 %v716
    %v773 = vpop.f32.mrf.mxu0
    %v774 = vadd.f32 %v698, %v773
    %775 = vmatmul.f32.gmra.mxu0 %v719
    %v776 = vpop.f32.mrf.mxu0
    %v777 = vadd.f32 %v703, %v776
    %778 = vmatmul.f32.gmra.mxu0 %v722
    %v779 = vpop.f32.mrf.mxu0
    %v780 = vadd.f32 %v708, %v779
    %781 = vmatmul.f32.gmra.mxu0 %v725
    %v782 = vpop.f32.mrf.mxu0
    %v783 = vadd.f32 %v713, %v782
    %784 = vdwg.mxu0
    %v785 = vmax.f32 %v745, 0.0
    %v786 = vmax.f32 %v774, 0.0
    %v787 = vmax.f32 %v748, 0.0
    %v788 = vmax.f32 %v777, 0.0
    %v789 = vmax.f32 %v751, 0.0
    %v790 = vmax.f32 %v780, 0.0
    %v791 = vmax.f32 %v754, 0.0
    %v792 = vmax.f32 %v783, 0.0
    %s793 = scalar_lea.vmem %s1, 224
    %v794 = vld [vmem:[%s793] sm:$0xff]
    %v795 = vld [vmem:[%s793 + $0x8] sm:$0xff]
    %v796 = vld [vmem:[%s793 + $0x10] sm:$0xff]
    %v797 = vld [vmem:[%s793 + $0x18] sm:$0xff]
    %s798 = scalar_lea.vmem %s2, 224
    %v799 = vld [vmem:[%s798] sm:$0xff]
    %v800 = vld [vmem:[%s798 + $0x8] sm:$0xff]
    %v801 = vld [vmem:[%s798 + $0x10] sm:$0xff]
    %v802 = vld [vmem:[%s798 + $0x18] sm:$0xff]
    %804 = vset.pattern.permute.xlu0 0
    %805 = vperm.xlu0 %804, %v799
    %v806 = vpop.permute.xlu0 %805
    %809 = vset.pattern.permute.xlu0 0
    %810 = vperm.xlu0 %809, %v800
    %v811 = vpop.permute.xlu0 %810
    %814 = vset.pattern.permute.xlu0 0
    %815 = vperm.xlu0 %814, %v801
    %v816 = vpop.permute.xlu0 %815
    %819 = vset.pattern.permute.xlu0 0
    %820 = vperm.xlu0 %819, %v802
    %v821 = vpop.permute.xlu0 %820
    %v824 = vsel %vm66, %v794, 0
    %v827 = vsel %vm66, %v795, 0
    %v830 = vsel %vm66, %v796, 0
    %v833 = vsel %vm66, %v797, 0
    %835 = vmatpush.msra.mxu0 0.0
    %836 = vmatpush.msra.mxu0 0.0
    %837 = vmatpush.msra.mxu0 0.0
    %838 = vmatpush.msra.mxu0 0.0
    %839 = vmatpush.msra.mxu0 0.0
    %840 = vmatpush.msra.mxu0 0.0
    %841 = vmatpush.msra.mxu0 0.0
    %842 = vmatpush.msra.mxu0 0.0
    %843 = vmatpush.msra.mxu0 0.0
    %844 = vmatpush.msra.mxu0 0.0
    %845 = vmatpush.msra.mxu0 0.0
    %846 = vmatpush.msra.mxu0 0.0
    %847 = vmatpush.msra.mxu0 %v791
    %848 = vmatpush.msra.mxu0 %v789
    %849 = vmatpush.msra.mxu0 %v787
    %850 = vmatpush.msra.mxu0 %v785
    %851 = vmatmul.f32.gmra.mxu0 %v824
    %v852 = vpop.f32.mrf.mxu0
    %v853 = vadd.f32 %v806, %v852
    %854 = vmatmul.f32.gmra.mxu0 %v827
    %v855 = vpop.f32.mrf.mxu0
    %v856 = vadd.f32 %v811, %v855
    %857 = vmatmul.f32.gmra.mxu0 %v830
    %v858 = vpop.f32.mrf.mxu0
    %v859 = vadd.f32 %v816, %v858
    %860 = vmatmul.f32.gmra.mxu0 %v833
    %v861 = vpop.f32.mrf.mxu0
    %v862 = vadd.f32 %v821, %v861
    %863 = vdwg.mxu0
    %864 = vmatpush.msra.mxu0 0.0
    %865 = vmatpush.msra.mxu0 0.0
    %866 = vmatpush.msra.mxu0 0.0
    %867 = vmatpush.msra.mxu0 0.0
    %868 = vmatpush.msra.mxu0 0.0
    %869 = vmatpush.msra.mxu0 0.0
    %870 = vmatpush.msra.mxu0 0.0
    %871 = vmatpush.msra.mxu0 0.0
    %872 = vmatpush.msra.mxu0 0.0
    %873 = vmatpush.msra.mxu0 0.0
    %874 = vmatpush.msra.mxu0 0.0
    %875 = vmatpush.msra.mxu0 0.0
    %876 = vmatpush.msra.mxu0 %v792
    %877 = vmatpush.msra.mxu0 %v790
    %878 = vmatpush.msra.mxu0 %v788
    %879 = vmatpush.msra.mxu0 %v786
    %880 = vmatmul.f32.gmra.mxu0 %v824
    %v881 = vpop.f32.mrf.mxu0
    %v882 = vadd.f32 %v806, %v881
    %883 = vmatmul.f32.gmra.mxu0 %v827
    %v884 = vpop.f32.mrf.mxu0
    %v885 = vadd.f32 %v811, %v884
    %886 = vmatmul.f32.gmra.mxu0 %v830
    %v887 = vpop.f32.mrf.mxu0
    %v888 = vadd.f32 %v816, %v887
    %889 = vmatmul.f32.gmra.mxu0 %v833
    %v890 = vpop.f32.mrf.mxu0
    %v891 = vadd.f32 %v821, %v890
    %892 = vdwg.mxu0
    %v893 = vmax.f32 %v853, 0.0
    %v894 = vmax.f32 %v882, 0.0
    %v895 = vmax.f32 %v856, 0.0
    %v896 = vmax.f32 %v885, 0.0
    %v897 = vmax.f32 %v859, 0.0
    %v898 = vmax.f32 %v888, 0.0
    %v899 = vmax.f32 %v862, 0.0
    %v900 = vmax.f32 %v891, 0.0
    %s901 = scalar_lea.vmem %s1, 256
    %v902 = vld [vmem:[%s901] sm:$0xff]
    %v903 = vld [vmem:[%s901 + $0x8] sm:$0xff]
    %v904 = vld [vmem:[%s901 + $0x10] sm:$0xff]
    %v905 = vld [vmem:[%s901 + $0x18] sm:$0xff]
    %s906 = scalar_lea.vmem %s2, 256
    %v907 = vld [vmem:[%s906] sm:$0xff]
    %v908 = vld [vmem:[%s906 + $0x8] sm:$0xff]
    %v909 = vld [vmem:[%s906 + $0x10] sm:$0xff]
    %v910 = vld [vmem:[%s906 + $0x18] sm:$0xff]
    %912 = vset.pattern.permute.xlu0 0
    %913 = vperm.xlu0 %912, %v907
    %v914 = vpop.permute.xlu0 %913
    %917 = vset.pattern.permute.xlu0 0
    %918 = vperm.xlu0 %917, %v908
    %v919 = vpop.permute.xlu0 %918
    %922 = vset.pattern.permute.xlu0 0
    %923 = vperm.xlu0 %922, %v909
    %v924 = vpop.permute.xlu0 %923
    %927 = vset.pattern.permute.xlu0 0
    %928 = vperm.xlu0 %927, %v910
    %v929 = vpop.permute.xlu0 %928
    %v932 = vsel %vm66, %v902, 0
    %v935 = vsel %vm66, %v903, 0
    %v938 = vsel %vm66, %v904, 0
    %v941 = vsel %vm66, %v905, 0
    %943 = vmatpush.msra.mxu0 0.0
    %944 = vmatpush.msra.mxu0 0.0
    %945 = vmatpush.msra.mxu0 0.0
    %946 = vmatpush.msra.mxu0 0.0
    %947 = vmatpush.msra.mxu0 0.0
    %948 = vmatpush.msra.mxu0 0.0
    %949 = vmatpush.msra.mxu0 0.0
    %950 = vmatpush.msra.mxu0 0.0
    %951 = vmatpush.msra.mxu0 0.0
    %952 = vmatpush.msra.mxu0 0.0
    %953 = vmatpush.msra.mxu0 0.0
    %954 = vmatpush.msra.mxu0 0.0
    %955 = vmatpush.msra.mxu0 %v899
    %956 = vmatpush.msra.mxu0 %v897
    %957 = vmatpush.msra.mxu0 %v895
    %958 = vmatpush.msra.mxu0 %v893
    %959 = vmatmul.f32.gmra.mxu0 %v932
    %v960 = vpop.f32.mrf.mxu0
    %v961 = vadd.f32 %v914, %v960
    %962 = vmatmul.f32.gmra.mxu0 %v935
    %v963 = vpop.f32.mrf.mxu0
    %v964 = vadd.f32 %v919, %v963
    %965 = vmatmul.f32.gmra.mxu0 %v938
    %v966 = vpop.f32.mrf.mxu0
    %v967 = vadd.f32 %v924, %v966
    %968 = vmatmul.f32.gmra.mxu0 %v941
    %v969 = vpop.f32.mrf.mxu0
    %v970 = vadd.f32 %v929, %v969
    %971 = vdwg.mxu0
    %972 = vmatpush.msra.mxu0 0.0
    %973 = vmatpush.msra.mxu0 0.0
    %974 = vmatpush.msra.mxu0 0.0
    %975 = vmatpush.msra.mxu0 0.0
    %976 = vmatpush.msra.mxu0 0.0
    %977 = vmatpush.msra.mxu0 0.0
    %978 = vmatpush.msra.mxu0 0.0
    %979 = vmatpush.msra.mxu0 0.0
    %980 = vmatpush.msra.mxu0 0.0
    %981 = vmatpush.msra.mxu0 0.0
    %982 = vmatpush.msra.mxu0 0.0
    %983 = vmatpush.msra.mxu0 0.0
    %984 = vmatpush.msra.mxu0 %v900
    %985 = vmatpush.msra.mxu0 %v898
    %986 = vmatpush.msra.mxu0 %v896
    %987 = vmatpush.msra.mxu0 %v894
    %988 = vmatmul.f32.gmra.mxu0 %v932
    %v989 = vpop.f32.mrf.mxu0
    %v990 = vadd.f32 %v914, %v989
    %991 = vmatmul.f32.gmra.mxu0 %v935
    %v992 = vpop.f32.mrf.mxu0
    %v993 = vadd.f32 %v919, %v992
    %994 = vmatmul.f32.gmra.mxu0 %v938
    %v995 = vpop.f32.mrf.mxu0
    %v996 = vadd.f32 %v924, %v995
    %997 = vmatmul.f32.gmra.mxu0 %v941
    %v998 = vpop.f32.mrf.mxu0
    %v999 = vadd.f32 %v929, %v998
    %1000 = vdwg.mxu0
    %v1001 = vadd.f32 %v677, %v961
    %v1002 = vadd.f32 %v678, %v990
    %v1003 = vadd.f32 %v679, %v964
    %v1004 = vadd.f32 %v680, %v993
    %v1005 = vadd.f32 %v681, %v967
    %v1006 = vadd.f32 %v682, %v996
    %v1007 = vadd.f32 %v683, %v970
    %v1008 = vadd.f32 %v684, %v999
    %s1009 = scalar_lea.vmem %s1, 288
    %v1010 = vld [vmem:[%s1009] sm:$0xff]
    %v1011 = vld [vmem:[%s1009 + $0x8] sm:$0xff]
    %v1012 = vld [vmem:[%s1009 + $0x10] sm:$0xff]
    %v1013 = vld [vmem:[%s1009 + $0x18] sm:$0xff]
    %s1014 = scalar_lea.vmem %s2, 288
    %v1015 = vld [vmem:[%s1014] sm:$0xff]
    %v1016 = vld [vmem:[%s1014 + $0x8] sm:$0xff]
    %v1017 = vld [vmem:[%s1014 + $0x10] sm:$0xff]
    %v1018 = vld [vmem:[%s1014 + $0x18] sm:$0xff]
    %1020 = vset.pattern.permute.xlu0 0
    %1021 = vperm.xlu0 %1020, %v1015
    %v1022 = vpop.permute.xlu0 %1021
    %1025 = vset.pattern.permute.xlu0 0
    %1026 = vperm.xlu0 %1025, %v1016
    %v1027 = vpop.permute.xlu0 %1026
    %1030 = vset.pattern.permute.xlu0 0
    %1031 = vperm.xlu0 %1030, %v1017
    %v1032 = vpop.permute.xlu0 %1031
    %1035 = vset.pattern.permute.xlu0 0
    %1036 = vperm.xlu0 %1035, %v1018
    %v1037 = vpop.permute.xlu0 %1036
    %v1040 = vsel %vm66, %v1010, 0
    %v1043 = vsel %vm66, %v1011, 0
    %v1046 = vsel %vm66, %v1012, 0
    %v1049 = vsel %vm66, %v1013, 0
    %1051 = vmatpush.msra.mxu0 0.0
    %1052 = vmatpush.msra.mxu0 0.0
    %1053 = vmatpush.msra.mxu0 0.0
    %1054 = vmatpush.msra.mxu0 0.0
    %1055 = vmatpush.msra.mxu0 0.0
    %1056 = vmatpush.msra.mxu0 0.0
    %1057 = vmatpush.msra.mxu0 0.0
    %1058 = vmatpush.msra.mxu0 0.0
    %1059 = vmatpush.msra.mxu0 0.0
    %1060 = vmatpush.msra.mxu0 0.0
    %1061 = vmatpush.msra.mxu0 0.0
    %1062 = vmatpush.msra.mxu0 0.0
    %1063 = vmatpush.msra.mxu0 %v1007
    %1064 = vmatpush.msra.mxu0 %v1005
    %1065 = vmatpush.msra.mxu0 %v1003
    %1066 = vmatpush.msra.mxu0 %v1001
    %1067 = vmatmul.f32.gmra.mxu0 %v1040
    %v1068 = vpop.f32.mrf.mxu0
    %v1069 = vadd.f32 %v1022, %v1068
    %1070 = vmatmul.f32.gmra.mxu0 %v1043
    %v1071 = vpop.f32.mrf.mxu0
    %v1072 = vadd.f32 %v1027, %v1071
    %1073 = vmatmul.f32.gmra.mxu0 %v1046
    %v1074 = vpop.f32.mrf.mxu0
    %v1075 = vadd.f32 %v1032, %v1074
    %1076 = vmatmul.f32.gmra.mxu0 %v1049
    %v1077 = vpop.f32.mrf.mxu0
    %v1078 = vadd.f32 %v1037, %v1077
    %1079 = vdwg.mxu0
    %1080 = vmatpush.msra.mxu0 0.0
    %1081 = vmatpush.msra.mxu0 0.0
    %1082 = vmatpush.msra.mxu0 0.0
    %1083 = vmatpush.msra.mxu0 0.0
    %1084 = vmatpush.msra.mxu0 0.0
    %1085 = vmatpush.msra.mxu0 0.0
    %1086 = vmatpush.msra.mxu0 0.0
    %1087 = vmatpush.msra.mxu0 0.0
    %1088 = vmatpush.msra.mxu0 0.0
    %1089 = vmatpush.msra.mxu0 0.0
    %1090 = vmatpush.msra.mxu0 0.0
    %1091 = vmatpush.msra.mxu0 0.0
    %1092 = vmatpush.msra.mxu0 %v1008
    %1093 = vmatpush.msra.mxu0 %v1006
    %1094 = vmatpush.msra.mxu0 %v1004
    %1095 = vmatpush.msra.mxu0 %v1002
    %1096 = vmatmul.f32.gmra.mxu0 %v1040
    %v1097 = vpop.f32.mrf.mxu0
    %v1098 = vadd.f32 %v1022, %v1097
    %1099 = vmatmul.f32.gmra.mxu0 %v1043
    %v1100 = vpop.f32.mrf.mxu0
    %v1101 = vadd.f32 %v1027, %v1100
    %1102 = vmatmul.f32.gmra.mxu0 %v1046
    %v1103 = vpop.f32.mrf.mxu0
    %v1104 = vadd.f32 %v1032, %v1103
    %1105 = vmatmul.f32.gmra.mxu0 %v1049
    %v1106 = vpop.f32.mrf.mxu0
    %v1107 = vadd.f32 %v1037, %v1106
    %1108 = vdwg.mxu0
    %v1109 = vmax.f32 %v1069, 0.0
    %v1110 = vmax.f32 %v1098, 0.0
    %v1111 = vmax.f32 %v1072, 0.0
    %v1112 = vmax.f32 %v1101, 0.0
    %v1113 = vmax.f32 %v1075, 0.0
    %v1114 = vmax.f32 %v1104, 0.0
    %v1115 = vmax.f32 %v1078, 0.0
    %v1116 = vmax.f32 %v1107, 0.0
    %s1117 = scalar_lea.vmem %s1, 320
    %v1118 = vld [vmem:[%s1117] sm:$0xff]
    %v1119 = vld [vmem:[%s1117 + $0x8] sm:$0xff]
    %v1120 = vld [vmem:[%s1117 + $0x10] sm:$0xff]
    %v1121 = vld [vmem:[%s1117 + $0x18] sm:$0xff]
    %s1122 = scalar_lea.vmem %s2, 320
    %v1123 = vld [vmem:[%s1122] sm:$0xff]
    %v1124 = vld [vmem:[%s1122 + $0x8] sm:$0xff]
    %v1125 = vld [vmem:[%s1122 + $0x10] sm:$0xff]
    %v1126 = vld [vmem:[%s1122 + $0x18] sm:$0xff]
    %1128 = vset.pattern.permute.xlu0 0
    %1129 = vperm.xlu0 %1128, %v1123
    %v1130 = vpop.permute.xlu0 %1129
    %1133 = vset.pattern.permute.xlu0 0
    %1134 = vperm.xlu0 %1133, %v1124
    %v1135 = vpop.permute.xlu0 %1134
    %1138 = vset.pattern.permute.xlu0 0
    %1139 = vperm.xlu0 %1138, %v1125
    %v1140 = vpop.permute.xlu0 %1139
    %1143 = vset.pattern.permute.xlu0 0
    %1144 = vperm.xlu0 %1143, %v1126
    %v1145 = vpop.permute.xlu0 %1144
    %v1148 = vsel %vm66, %v1118, 0
    %v1151 = vsel %vm66, %v1119, 0
    %v1154 = vsel %vm66, %v1120, 0
    %v1157 = vsel %vm66, %v1121, 0
    %1159 = vmatpush.msra.mxu0 0.0
    %1160 = vmatpush.msra.mxu0 0.0
    %1161 = vmatpush.msra.mxu0 0.0
    %1162 = vmatpush.msra.mxu0 0.0
    %1163 = vmatpush.msra.mxu0 0.0
    %1164 = vmatpush.msra.mxu0 0.0
    %1165 = vmatpush.msra.mxu0 0.0
    %1166 = vmatpush.msra.mxu0 0.0
    %1167 = vmatpush.msra.mxu0 0.0
    %1168 = vmatpush.msra.mxu0 0.0
    %1169 = vmatpush.msra.mxu0 0.0
    %1170 = vmatpush.msra.mxu0 0.0
    %1171 = vmatpush.msra.mxu0 %v1115
    %1172 = vmatpush.msra.mxu0 %v1113
    %1173 = vmatpush.msra.mxu0 %v1111
    %1174 = vmatpush.msra.mxu0 %v1109
    %1175 = vmatmul.f32.gmra.mxu0 %v1148
    %v1176 = vpop.f32.mrf.mxu0
    %v1177 = vadd.f32 %v1130, %v1176
    %1178 = vmatmul.f32.gmra.mxu0 %v1151
    %v1179 = vpop.f32.mrf.mxu0
    %v1180 = vadd.f32 %v1135, %v1179
    %1181 = vmatmul.f32.gmra.mxu0 %v1154
    %v1182 = vpop.f32.mrf.mxu0
    %v1183 = vadd.f32 %v1140, %v1182
    %1184 = vmatmul.f32.gmra.mxu0 %v1157
    %v1185 = vpop.f32.mrf.mxu0
    %v1186 = vadd.f32 %v1145, %v1185
    %1187 = vdwg.mxu0
    %1188 = vmatpush.msra.mxu0 0.0
    %1189 = vmatpush.msra.mxu0 0.0
    %1190 = vmatpush.msra.mxu0 0.0
    %1191 = vmatpush.msra.mxu0 0.0
    %1192 = vmatpush.msra.mxu0 0.0
    %1193 = vmatpush.msra.mxu0 0.0
    %1194 = vmatpush.msra.mxu0 0.0
    %1195 = vmatpush.msra.mxu0 0.0
    %1196 = vmatpush.msra.mxu0 0.0
    %1197 = vmatpush.msra.mxu0 0.0
    %1198 = vmatpush.msra.mxu0 0.0
    %1199 = vmatpush.msra.mxu0 0.0
    %1200 = vmatpush.msra.mxu0 %v1116
    %1201 = vmatpush.msra.mxu0 %v1114
    %1202 = vmatpush.msra.mxu0 %v1112
    %1203 = vmatpush.msra.mxu0 %v1110
    %1204 = vmatmul.f32.gmra.mxu0 %v1148
    %v1205 = vpop.f32.mrf.mxu0
    %v1206 = vadd.f32 %v1130, %v1205
    %1207 = vmatmul.f32.gmra.mxu0 %v1151
    %v1208 = vpop.f32.mrf.mxu0
    %v1209 = vadd.f32 %v1135, %v1208
    %1210 = vmatmul.f32.gmra.mxu0 %v1154
    %v1211 = vpop.f32.mrf.mxu0
    %v1212 = vadd.f32 %v1140, %v1211
    %1213 = vmatmul.f32.gmra.mxu0 %v1157
    %v1214 = vpop.f32.mrf.mxu0
    %v1215 = vadd.f32 %v1145, %v1214
    %1216 = vdwg.mxu0
    %v1217 = vmax.f32 %v1177, 0.0
    %v1218 = vmax.f32 %v1206, 0.0
    %v1219 = vmax.f32 %v1180, 0.0
    %v1220 = vmax.f32 %v1209, 0.0
    %v1221 = vmax.f32 %v1183, 0.0
    %v1222 = vmax.f32 %v1212, 0.0
    %v1223 = vmax.f32 %v1186, 0.0
    %v1224 = vmax.f32 %v1215, 0.0
    %s1225 = scalar_lea.vmem %s1, 352
    %v1226 = vld [vmem:[%s1225] sm:$0xff]
    %v1227 = vld [vmem:[%s1225 + $0x8] sm:$0xff]
    %v1228 = vld [vmem:[%s1225 + $0x10] sm:$0xff]
    %v1229 = vld [vmem:[%s1225 + $0x18] sm:$0xff]
    %s1230 = scalar_lea.vmem %s2, 352
    %v1231 = vld [vmem:[%s1230] sm:$0xff]
    %v1232 = vld [vmem:[%s1230 + $0x8] sm:$0xff]
    %v1233 = vld [vmem:[%s1230 + $0x10] sm:$0xff]
    %v1234 = vld [vmem:[%s1230 + $0x18] sm:$0xff]
    %1236 = vset.pattern.permute.xlu0 0
    %1237 = vperm.xlu0 %1236, %v1231
    %v1238 = vpop.permute.xlu0 %1237
    %1241 = vset.pattern.permute.xlu0 0
    %1242 = vperm.xlu0 %1241, %v1232
    %v1243 = vpop.permute.xlu0 %1242
    %1246 = vset.pattern.permute.xlu0 0
    %1247 = vperm.xlu0 %1246, %v1233
    %v1248 = vpop.permute.xlu0 %1247
    %1250 = vset.pattern.permute.xlu0 0
    %1251 = vperm.xlu0 %1250, %v1234
    %v1252 = vpop.permute.xlu0 %1251
    %v1254 = vsel %vm66, %v1226, 0
    %v1257 = vsel %vm66, %v1227, 0
    %v1260 = vsel %vm66, %v1228, 0
    %v1263 = vsel %vm66, %v1229, 0
    %1265 = vmatpush.msra.mxu0 0.0
    %1266 = vmatpush.msra.mxu0 0.0
    %1267 = vmatpush.msra.mxu0 0.0
    %1268 = vmatpush.msra.mxu0 0.0
    %1269 = vmatpush.msra.mxu0 0.0
    %1270 = vmatpush.msra.mxu0 0.0
    %1271 = vmatpush.msra.mxu0 0.0
    %1272 = vmatpush.msra.mxu0 0.0
    %1273 = vmatpush.msra.mxu0 0.0
    %1274 = vmatpush.msra.mxu0 0.0
    %1275 = vmatpush.msra.mxu0 0.0
    %1276 = vmatpush.msra.mxu0 0.0
    %1277 = vmatpush.msra.mxu0 %v1223
    %1278 = vmatpush.msra.mxu0 %v1221
    %1279 = vmatpush.msra.mxu0 %v1219
    %1280 = vmatpush.msra.mxu0 %v1217
    %1281 = vmatmul.f32.gmra.mxu0 %v1254
    %v1282 = vpop.f32.mrf.mxu0
    %v1283 = vadd.f32 %v1238, %v1282
    %1284 = vmatmul.f32.gmra.mxu0 %v1257
    %v1285 = vpop.f32.mrf.mxu0
    %v1286 = vadd.f32 %v1243, %v1285
    %1287 = vmatmul.f32.gmra.mxu0 %v1260
    %v1288 = vpop.f32.mrf.mxu0
    %1289 = vmatmul.f32.gmra.mxu0 %v1263
    %v1290 = vpop.f32.mrf.mxu0
    %1291 = vdwg.mxu0
    %1292 = vmatpush.msra.mxu0 0.0
    %1293 = vmatpush.msra.mxu0 0.0
    %1294 = vmatpush.msra.mxu0 0.0
    %1295 = vmatpush.msra.mxu0 0.0
    %1296 = vmatpush.msra.mxu0 0.0
    %1297 = vmatpush.msra.mxu0 0.0
    %1298 = vmatpush.msra.mxu0 0.0
    %1299 = vmatpush.msra.mxu0 0.0
    %1300 = vmatpush.msra.mxu0 0.0
    %1301 = vmatpush.msra.mxu0 0.0
    %1302 = vmatpush.msra.mxu0 0.0
    %1303 = vmatpush.msra.mxu0 0.0
    %1304 = vmatpush.msra.mxu0 %v1224
    %1305 = vmatpush.msra.mxu0 %v1222
    %1306 = vmatpush.msra.mxu0 %v1220
    %1307 = vmatpush.msra.mxu0 %v1218
    %1308 = vmatmul.f32.gmra.mxu0 %v1254
    %v1309 = vpop.f32.mrf.mxu0
    %v1310 = vadd.f32 %v1238, %v1309
    %1311 = vmatmul.f32.gmra.mxu0 %v1257
    %v1312 = vpop.f32.mrf.mxu0
    %v1313 = vadd.f32 %v1243, %v1312
    %1314 = vmatmul.f32.gmra.mxu0 %v1260
    %v1315 = vpop.f32.mrf.mxu0
    %1316 = vmatmul.f32.gmra.mxu0 %v1263
    %v1317 = vpop.f32.mrf.mxu0
    %1318 = vdwg.mxu0
    %v1319 = vadd.f32 %v1001, %v1283
    %v1320 = vadd.f32 %v1002, %v1310
    %v1321 = vadd.f32 %v1003, %v1286
    %v1322 = vadd.f32 %v1004, %v1313
    %v1323 = vld [vmem:[%s3] sm:$0xff]
    %v1324 = vld [vmem:[%s3 + $0x8] sm:$0xff]
    %1326 = vset.pattern.permute.xlu0 0
    %1327 = vperm.xlu0 %1326, %v1323
    %v1328 = vpop.permute.xlu0 %1327
    %1331 = vset.pattern.permute.xlu0 0
    %1332 = vperm.xlu0 %1331, %v1324
    %v1333 = vpop.permute.xlu0 %1332
    %v1335 = vmul.f32 %v1319, %v1328
    %v1336 = vmul.f32 %v1320, %v1328
    %v1337 = vmul.f32 %v1321, %v1333
    %v1338 = vmul.f32 %v1322, %v1333
    %1339 = vst [vmem:[#allocation5] sm:$0xff] %v1335
    %1340 = vst [vmem:[#allocation5 + $0x8] sm:$0xff] %v1336
    %1341 = vst [vmem:[#allocation5 + $0x10] sm:$0xff] %v1337
    %1342 = vst [vmem:[#allocation5 + $0x18] sm:$0xff] %v1338
    // Predicated region
    $region22: #{tpu_custom_call.1} parent=1 // pred_check
      _
    $region23: #{tpu_custom_call.1} parent=1 // pred_check_branch
      %1344 = sbr.rel (0) target = $region25
    $region24: #{tpu_custom_call.1} parent=1 // pred_region
      %1346 = vsyncadd [#allocation4], 0
      %s1347 = sshll.u32 [#allocation5], 4
      %s1348 = int_to_ptr.vmem [resolvable:$true] %s1347
      %s1349 = sshll.u32 %s4, 4
      %s1350 = int_to_ptr.hbm [resolvable:$true] %s1349
      %1355 = dma.vmem_to_hbm [thread:$0]  %s1348, 512, %s1350, [#allocation4], 256, 256, 16
    $region25: #{tpu_custom_call.1} parent=1 // pred_fallthru
      _
    // Predicated region
    $region26: #{tpu_custom_call.1} parent=1 // pred_check
      _
    $region27: #{tpu_custom_call.1} parent=1 // pred_check_branch
      %1357 = sbr.rel (0) target = $region29
    $region28: #{tpu_custom_call.1} parent=1 // pred_region
      %1359 = dma.done [#allocation4], 512
    $region29: #{tpu_custom_call.1} parent=1 // pred_fallthru
      _
    %1360 = vsyncpa [#allocation3], 1
    %1361 = vsyncpa [#allocation4], 1

</llo_original>
